<compile_context>
chip_gen: v7x
topology: tpu7x:2x2x1
jax: 0.10.0
libtpu: 0.0.40
codegen_flags: <defaults>
</compile_context>

<pallas_src>
import functools
import math

import jax
import jax.numpy as jnp
from jax.experimental import pallas as pl
from jax.experimental.pallas import tpu as pltpu


def _round_up(x: int, m: int) -> int:
    return (x + m - 1) // m * m


# -----------------------------------------------------------------------------
# Kernel bodies
# -----------------------------------------------------------------------------
def _gru_gate_math(x, h_bf, wx_ref, wh_ref, bx_ref, bhn_ref, tn):
    """Shared gate math for one (batch block, gate tile).

    x      : (Bblk, Ip)  bf16
    h_bf   : (Bblk, Hp)  bf16
    wx_ref : (Ip, 3*tn)  bf16   [W_ir^T | W_iz^T | W_in^T] columns of this tile
    wh_ref : (Hp, 3*tn)  bf16   [W_hr^T | W_hz^T | W_hn^T] columns of this tile
    bx_ref : (1, 3*tn)   f32    [b_ir+b_hr | b_iz+b_hz | b_in] of this tile
    bhn_ref: (1, tn)     f32    b_hn of this tile
    Returns (z, n) as f32 (Bblk, tn).  Slices are at 128-lane multiples.
    """
    gx = jnp.dot(x, wx_ref[...], preferred_element_type=jnp.float32) + bx_ref[...]
    gh = jnp.dot(h_bf, wh_ref[...], preferred_element_type=jnp.float32)
    r = jax.nn.sigmoid(gx[:, 0:tn] + gh[:, 0:tn])
    z = jax.nn.sigmoid(gx[:, tn:2 * tn] + gh[:, tn:2 * tn])
    n = jnp.tanh(gx[:, 2 * tn:3 * tn] + r * (gh[:, 2 * tn:3 * tn] + bhn_ref[...]))
    return z, n


def _gru_kernel_single(x_ref, h_ref, wx_ref, wh_ref, bx_ref, bhn_ref, out_ref, *, tn):
    """nt == 1: the gate tile covers the whole padded hidden dim; h streamed once."""
    h = h_ref[...]                                     # f32, reused for the final blend
    z, n = _gru_gate_math(x_ref[...], h.astype(wh_ref.dtype),
                          wx_ref, wh_ref, bx_ref, bhn_ref, tn)
    # h' = (1 - z) * n + z * h  ==  n + z * (h - n)   (one fewer VPU op)
    out_ref[...] = (n + z * (h - n)).astype(out_ref.dtype)


def _gru_kernel_tiled(x_ref, h_ref, hj_ref, wx_ref, wh_ref, bx_ref, bhn_ref,
                      out_ref, *, tn):
    """nt > 1: full h feeds the Wh contraction; hj_ref is the tn-wide blend tile."""
    z, n = _gru_gate_math(x_ref[...], h_ref[...].astype(wh_ref.dtype),
                          wx_ref, wh_ref, bx_ref, bhn_ref, tn)
    h_j = hj_ref[...]                                  # f32 blend tile of h
    out_ref[...] = (n + z * (h_j - n)).astype(out_ref.dtype)


# -----------------------------------------------------------------------------
# One-time parameter preparation (layout glue done OUTSIDE the hot path)
# -----------------------------------------------------------------------------
def _default_n_tiles(Hp: int, Ip: int) -> int:
    """Number of gate tiles along the hidden dim (tile width Hp//nt, a 128-multiple)."""
    m = Hp // 128
    if m == 1:
        return 1
    full_w_bytes = (Ip + Hp) * 3 * Hp * 2              # bf16 Wx + Wh slabs
    budget = 6 << 20                                   # per-tile weight budget (v7x-friendly)
    nt = m
    for d in range(1, m + 1):
        if m % d == 0 and full_w_bytes // d <= budget:
            nt = d
            break
    if nt == 1 and m >= 4:
        # Give the second TensorCore (v7x) an N axis to split even when the
        # batch grid is a single block.
        for d in range(2, m + 1):
            if m % d == 0:
                nt = d
                break
    return nt


def prepare_gru_params(weight_ih, weight_hh, bias_ih, bias_hh, *, n_tiles=None):
    """Transpose / pad / tile-group / bf16-cast the GRUCell parameters (once).

    weight_ih: (3H, I), weight_hh: (3H, H), bias_*: (3H,)  (PyTorch layout).
    """
    three_h, I = weight_ih.shape
    H = three_h // 3
    Hp = _round_up(H, 128)            # lane-aligned gate width
    Ip = _round_up(I, 128)            # lane-aligned input width

    nt = _default_n_tiles(Hp, Ip) if n_tiles is None else int(n_tiles)
    assert Hp % nt == 0 and (Hp // nt) % 128 == 0, "n_tiles must divide Hp/128"
    tn = Hp // nt

    w_ih = jnp.asarray(weight_ih, jnp.float32)
    w_hh = jnp.asarray(weight_hh, jnp.float32)
    b_ih = jnp.asarray(bias_ih, jnp.float32)
    b_hh = jnp.asarray(bias_hh, jnp.float32)

    # Per-gate blocks, PyTorch stacking order [r; z; n].
    w_ir, w_iz, w_in = w_ih[:H], w_ih[H:2 * H], w_ih[2 * H:]
    w_hr, w_hz, w_hn = w_hh[:H], w_hh[H:2 * H], w_hh[2 * H:]
    b_ir, b_iz, b_in = b_ih[:H], b_ih[H:2 * H], b_ih[2 * H:]
    b_hr, b_hz, b_hn = b_hh[:H], b_hh[H:2 * H], b_hh[2 * H:]

    def pad2(w_t, rows, cols):        # zero-pad a (r, c) array up to (rows, cols)
        return jnp.pad(w_t, ((0, rows - w_t.shape[0]), (0, cols - w_t.shape[1])))

    def pad_b(b):
        return jnp.pad(b, (0, Hp - H))

    # Gate-major column layout first: [r | z | n], each Hp wide.
    wx_nat = jnp.concatenate(
        [pad2(w_ir.T, Ip, Hp), pad2(w_iz.T, Ip, Hp), pad2(w_in.T, Ip, Hp)], axis=1)
    wh_nat = jnp.concatenate(
        [pad2(w_hr.T, Hp, Hp), pad2(w_hz.T, Hp, Hp), pad2(w_hn.T, Hp, Hp)], axis=1)
    bx_nat = jnp.concatenate(
        [pad_b(b_ir + b_hr), pad_b(b_iz + b_hz), pad_b(b_in)]).reshape(1, 3 * Hp)

    def regroup(a):
        # gate-major columns -> tile-major columns: tile j gets [r_j | z_j | n_j].
        rows = a.shape[0]
        return jnp.transpose(a.reshape(rows, 3, nt, tn), (0, 2, 1, 3)).reshape(rows, 3 * Hp)

    return {
        "wx": regroup(wx_nat).astype(jnp.bfloat16),       # (Ip, 3*Hp)
        "wh": regroup(wh_nat).astype(jnp.bfloat16),       # (Hp, 3*Hp)
        "bx": regroup(bx_nat).astype(jnp.float32),        # (1, 3*Hp)
        "bhn": pad_b(b_hn).reshape(1, Hp).astype(jnp.float32),   # (1, Hp)
        "hidden": H, "input": I, "hp": Hp, "ip": Ip, "tn": tn, "nt": nt,
    }


# -----------------------------------------------------------------------------
# Pallas call wrapper
# -----------------------------------------------------------------------------
def gru_cell_pallas(x, h, params):
    """x: (B, I), h: (B, H) -> h': (B, H).  `params` from prepare_gru_params."""
    B, I = x.shape
    H, Hp, Ip = params["hidden"], params["hp"], params["ip"]
    tn, nt = params["tn"], params["nt"]
    assert I == params["input"] and h.shape == (B, H)

    # Batch block: up to 256 rows (amortizes ~0.35us/grid step and feeds the
    # 256-wide MXU on v6e/v7x), rounded to 16 rows (bf16 sublane tile).
    nb_target = pl.cdiv(B, 256)
    b_blk = min(256, _round_up(pl.cdiv(B, nb_target), 16))
    Bp = _round_up(B, b_blk)
    nb = Bp // b_blk

    # Per-call activation glue only (cheap): pad + bf16 cast; no concat.
    x_pad = x.astype(jnp.bfloat16)
    if (Bp, Ip) != (B, I):
        x_pad = jnp.pad(x_pad, ((0, Bp - B), (0, Ip - I)))
    h_pad = h.astype(jnp.float32)
    if (Bp, Hp) != (B, H):
        h_pad = jnp.pad(h_pad, ((0, Bp - B), (0, Hp - H)))

    out_itemsize = jnp.dtype(x.dtype).itemsize

    # --- Generation-aware VMEM budget (v7x: 64 MiB physical; v5e/v6e: 128 MiB).
    try:
        vmem_cap = int(pltpu.get_tpu_info().vmem_capacity_bytes)
    except Exception:
        vmem_cap = 128 << 20
    hard_cap = (48 << 20) if vmem_cap <= (64 << 20) else (100 << 20)

    w_bytes = (Ip + Hp) * 3 * tn * 2 + 4 * tn * 4            # bf16 weight tiles + f32 biases
    w_bufs = 1 if nt == 1 else 2                             # single-buffered when grid-constant
    act_bytes = b_blk * (Ip * 2 + Hp * 4 + tn * out_itemsize)
    if nt > 1:
        act_bytes += b_blk * tn * 4                          # blend-tile stream of h
    f32_tmp = b_blk * (2 * 3 * tn + 4 * tn) * 4 + b_blk * Hp * 2   # gx, gh, gates, h_bf16
    vmem_est = 2 * act_bytes + w_bufs * w_bytes + f32_tmp + (4 << 20)
    vmem_limit = int(min(max(vmem_est, 32 << 20), hard_cap))

    # Gate tiles outer so weight tiles stay VMEM-resident across batch blocks.
    grid = (nt, nb)

    def build(single_buffer_weights: bool):
        if single_buffer_weights:
            def wspec(shape, index_map):
                return pl.BlockSpec(shape, index_map, pipeline_mode=pl.Buffered(1))
        else:
            def wspec(shape, index_map):
                return pl.BlockSpec(shape, index_map)

        in_specs = [
            pl.BlockSpec((b_blk, Ip), lambda j, i: (i, 0)),   # x (bf16)
            pl.BlockSpec((b_blk, Hp), lambda j, i: (i, 0)),   # h (f32, contraction [+ blend])
        ]
        if nt == 1:
            kernel = functools.partial(_gru_kernel_single, tn=tn)
        else:
            kernel = functools.partial(_gru_kernel_tiled, tn=tn)
            in_specs.append(pl.BlockSpec((b_blk, tn), lambda j, i: (i, j)))  # h blend tile
        in_specs += [
            wspec((Ip, 3 * tn), lambda j, i: (0, j)),         # Wx tile
            wspec((Hp, 3 * tn), lambda j, i: (0, j)),         # Wh tile
            wspec((1, 3 * tn), lambda j, i: (0, j)),          # fused r/z/n input-bias tile
            wspec((1, tn), lambda j, i: (0, j)),              # b_hn tile
        ]
        return pl.pallas_call(
            kernel,
            out_shape=jax.ShapeDtypeStruct((Bp, Hp), x.dtype),
            grid=grid,
            in_specs=in_specs,
            out_specs=pl.BlockSpec((b_blk, tn), lambda j, i: (i, j)),
            compiler_params=pltpu.CompilerParams(
                dimension_semantics=("parallel", "parallel"),
                vmem_limit_bytes=vmem_limit,
            ),
        )

    args = [x_pad, h_pad]
    if nt > 1:
        args.append(h_pad)
    args += [params["wx"], params["wh"], params["bx"], params["bhn"]]

    try:
        out_pad = build(single_buffer_weights=(nt == 1))(*args)
    except Exception:
        # Fallback if this JAX build rejects pl.Buffered(1): default double buffering.
        out_pad = build(single_buffer_weights=False)(*args)

    if Bp == B and Hp == H:
        return out_pad
    return out_pad[:B, :H]


# -----------------------------------------------------------------------------
# Pure-JAX reference (same math as torch.nn.GRUCell)
# -----------------------------------------------------------------------------
def _gru_cell_reference(x, h, weight_ih, weight_hh, bias_ih, bias_hh, *,
                        mxu_dtype=jnp.float32):
    H = h.shape[1]
    xm, hm = x.astype(mxu_dtype), h.astype(mxu_dtype)
    wim, whm = weight_ih.astype(mxu_dtype), weight_hh.astype(mxu_dtype)
    gi = jnp.dot(xm, wim.T, preferred_element_type=jnp.float32) + bias_ih
    gh = jnp.dot(hm, whm.T, preferred_element_type=jnp.float32) + bias_hh
    i_r, i_z, i_n = gi[:, :H], gi[:, H:2 * H], gi[:, 2 * H:]
    h_r, h_z, h_n = gh[:, :H], gh[:, H:2 * H], gh[:, 2 * H:]
    r = jax.nn.sigmoid(i_r + h_r)
    z = jax.nn.sigmoid(i_z + h_z)
    n = jnp.tanh(i_n + r * h_n)
    return (1.0 - z) * n + z * h


if __name__ == "__main__":
    # ---- Test 1: GRULayer-consistent shapes & init --------------------------
    batch, input_size, hidden_size = 8, 32, 32
    key = jax.random.PRNGKey(0)
    k_x, k_h, k_wih, k_whh = jax.random.split(key, 4)

    # Deterministic init mirroring GRULayer.__init__:
    #   xavier_uniform_(weight_ih), orthogonal_(weight_hh), zero biases.
    fan_out, fan_in = 3 * hidden_size, input_size
    bound = math.sqrt(6.0 / (fan_in + fan_out))
    weight_ih = jax.random.uniform(
        k_wih, (3 * hidden_size, input_size), jnp.float32, -bound, bound)
    weight_hh = jax.nn.initializers.orthogonal()(
        k_whh, (3 * hidden_size, hidden_size), jnp.float32)
    bias_ih = jnp.zeros((3 * hidden_size,), jnp.float32)
    bias_hh = jnp.zeros((3 * hidden_size,), jnp.float32)

    x_input = jax.random.normal(k_x, (batch, input_size), jnp.float32)
    x_hidden = jax.random.normal(k_h, (batch, hidden_size), jnp.float32)

    params = prepare_gru_params(weight_ih, weight_hh, bias_ih, bias_hh)
    out = jax.block_until_ready(gru_cell_pallas(x_input, x_hidden, params))
    assert out.shape == (batch, hidden_size)

    # Check 1a: matched precision (bf16 MXU operands, f32 accumulation) -> tight.
    ref_bf16 = _gru_cell_reference(x_input, x_hidden, weight_ih, weight_hh,
                                   bias_ih, bias_hh, mxu_dtype=jnp.bfloat16)
    if not jnp.allclose(out, ref_bf16, atol=2e-3, rtol=2e-3):
        raise AssertionError(
            "Pallas GRU cell mismatch vs bf16-matched reference; max abs diff = "
            f"{float(jnp.max(jnp.abs(out - ref_bf16)))}")

    # Check 1b: full-f32 reference -> loose tolerance covering bf16 rounding.
    ref_f32 = _gru_cell_reference(x_input, x_hidden, weight_ih, weight_hh,
                                  bias_ih, bias_hh, mxu_dtype=jnp.float32)
    if not jnp.allclose(out, ref_f32, atol=3e-2, rtol=0):
        raise AssertionError(
            "Pallas GRU cell mismatch vs f32 reference; max abs diff = "
            f"{float(jnp.max(jnp.abs(out - ref_f32)))}")

    # ---- Test 2: exercise the hidden-dim (gate-tile) grid axis --------------
    b2, i2, h2 = 16, 48, 256
    ks = jax.random.split(jax.random.PRNGKey(1), 6)
    w_ih2 = jax.random.normal(ks[0], (3 * h2, i2), jnp.float32) / math.sqrt(i2)
    w_hh2 = jax.random.normal(ks[1], (3 * h2, h2), jnp.float32) / math.sqrt(h2)
    b_ih2 = 0.1 * jax.random.normal(ks[2], (3 * h2,), jnp.float32)
    b_hh2 = 0.1 * jax.random.normal(ks[3], (3 * h2,), jnp.float32)
    x2 = jax.random.normal(ks[4], (b2, i2), jnp.float32)
    hs2 = jax.random.normal(ks[5], (b2, h2), jnp.float32)

    params2 = prepare_gru_params(w_ih2, w_hh2, b_ih2, b_hh2, n_tiles=2)
    out2 = jax.block_until_ready(gru_cell_pallas(x2, hs2, params2))
    assert out2.shape == (b2, h2)
    ref2_bf16 = _gru_cell_reference(x2, hs2, w_ih2, w_hh2, b_ih2, b_hh2,
                                    mxu_dtype=jnp.bfloat16)
    ref2_f32 = _gru_cell_reference(x2, hs2, w_ih2, w_hh2, b_ih2, b_hh2,
                                   mxu_dtype=jnp.float32)
    if not (jnp.allclose(out2, ref2_bf16, atol=2e-3, rtol=2e-3)
            and jnp.allclose(out2, ref2_f32, atol=3e-2, rtol=0)):
        raise AssertionError(
            "Pallas GRU cell (tiled gate axis) mismatch; max abs diff vs bf16 ref = "
            f"{float(jnp.max(jnp.abs(out2 - ref2_bf16)))}")

    print("KERNEL_OK")
</pallas_src>

<mosaic_0001>
module attributes {stable_mosaic.version = 11 : i64} {
  func.func @_gru_kernel_single(%arg0: i32, %arg1: i32, %arg2: memref<16x128xbf16, #tpu.memory_space<vmem>>, %arg3: memref<16x128xf32, #tpu.memory_space<vmem>>, %arg4: memref<128x384xbf16, #tpu.memory_space<vmem>>, %arg5: memref<128x384xbf16, #tpu.memory_space<vmem>>, %arg6: memref<1x384xf32, #tpu.memory_space<vmem>>, %arg7: memref<1x128xf32, #tpu.memory_space<vmem>>, %arg8: memref<16x128xf32, #tpu.memory_space<vmem>>) attributes {dimension_semantics = [#tpu.dimension_semantics<parallel>, #tpu.dimension_semantics<parallel>], iteration_bounds = array<i64: 1, 1>, scalar_prefetch = 0 : i64, scratch_operands = 0 : i64, tpu.core_type = #tpu.core_type<tc>, window_params = [{transform_indices = @transform_0, window_bounds = array<i64: 16, 128>}, {transform_indices = @transform_1, window_bounds = array<i64: 16, 128>}, {pipeline_mode = #tpu.pipeline_mode<synchronous>, transform_indices = @transform_2, window_bounds = array<i64: 128, 384>}, {pipeline_mode = #tpu.pipeline_mode<synchronous>, transform_indices = @transform_3, window_bounds = array<i64: 128, 384>}, {pipeline_mode = #tpu.pipeline_mode<synchronous>, transform_indices = @transform_4, window_bounds = array<i64: 1, 384>}, {pipeline_mode = #tpu.pipeline_mode<synchronous>, transform_indices = @transform_5, window_bounds = array<i64: 1, 128>}, {transform_indices = @transform_6, window_bounds = array<i64: 16, 128>}]} {
    %c0 = arith.constant 0 : index
    %c0_0 = arith.constant 0 : index
    %0 = vector.load %arg3[%c0, %c0_0] : memref<16x128xf32, #tpu.memory_space<vmem>>, vector<16x128xf32>
    %c0_1 = arith.constant 0 : index
    %c0_2 = arith.constant 0 : index
    %1 = vector.load %arg2[%c0_1, %c0_2] : memref<16x128xbf16, #tpu.memory_space<vmem>>, vector<16x128xbf16>
    %2 = arith.truncf %0 : vector<16x128xf32> to vector<16x128xbf16>
    %c0_3 = arith.constant 0 : index
    %c0_4 = arith.constant 0 : index
    %3 = vector.load %arg4[%c0_3, %c0_4] : memref<128x384xbf16, #tpu.memory_space<vmem>>, vector<128x384xbf16>
    %cst = arith.constant dense<0.000000e+00> : vector<16x384xf32>
    %4 = tpu.matmul %1, %3, %cst {dimension_numbers = #tpu.dot_dimension_numbers<[1], [0], [0], [1], [0, 0, 1, 1], [], []>} : vector<16x128xbf16>, vector<128x384xbf16>, vector<16x384xf32> -> vector<16x384xf32>
    %c0_5 = arith.constant 0 : index
    %c0_6 = arith.constant 0 : index
    %5 = vector.load %arg6[%c0_5, %c0_6] : memref<1x384xf32, #tpu.memory_space<vmem>>, vector<1x384xf32>
    %6 = vector.broadcast %5 : vector<1x384xf32> to vector<16x384xf32>
    %7 = arith.addf %4, %6 : vector<16x384xf32>
    %c0_7 = arith.constant 0 : index
    %c0_8 = arith.constant 0 : index
    %8 = vector.load %arg5[%c0_7, %c0_8] : memref<128x384xbf16, #tpu.memory_space<vmem>>, vector<128x384xbf16>
    %cst_9 = arith.constant dense<0.000000e+00> : vector<16x384xf32>
    %9 = tpu.matmul %2, %8, %cst_9 {dimension_numbers = #tpu.dot_dimension_numbers<[1], [0], [0], [1], [0, 0, 1, 1], [], []>} : vector<16x128xbf16>, vector<128x384xbf16>, vector<16x384xf32> -> vector<16x384xf32>
    %10 = vector.extract_strided_slice %7 {offsets = [0, 0], sizes = [16, 128], strides = [1, 1]} : vector<16x384xf32> to vector<16x128xf32>
    %11 = vector.extract_strided_slice %9 {offsets = [0, 0], sizes = [16, 128], strides = [1, 1]} : vector<16x384xf32> to vector<16x128xf32>
    %12 = arith.addf %10, %11 : vector<16x128xf32>
    %13 = arith.negf %12 : vector<16x128xf32>
    %14 = math.exp %13 : vector<16x128xf32>
    %cst_10 = arith.constant 1.000000e+00 : f32
    %15 = vector.broadcast %cst_10 : f32 to vector<16x128xf32>
    %16 = arith.addf %15, %14 : vector<16x128xf32>
    %17 = arith.divf %15, %16 : vector<16x128xf32>
    %18 = vector.extract_strided_slice %7 {offsets = [0, 128], sizes = [16, 128], strides = [1, 1]} : vector<16x384xf32> to vector<16x128xf32>
    %19 = vector.extract_strided_slice %9 {offsets = [0, 128], sizes = [16, 128], strides = [1, 1]} : vector<16x384xf32> to vector<16x128xf32>
    %20 = arith.addf %18, %19 : vector<16x128xf32>
    %21 = arith.negf %20 : vector<16x128xf32>
    %22 = math.exp %21 : vector<16x128xf32>
    %cst_11 = arith.constant 1.000000e+00 : f32
    %23 = vector.broadcast %cst_11 : f32 to vector<16x128xf32>
    %24 = arith.addf %23, %22 : vector<16x128xf32>
    %25 = arith.divf %23, %24 : vector<16x128xf32>
    %26 = vector.extract_strided_slice %7 {offsets = [0, 256], sizes = [16, 128], strides = [1, 1]} : vector<16x384xf32> to vector<16x128xf32>
    %27 = vector.extract_strided_slice %9 {offsets = [0, 256], sizes = [16, 128], strides = [1, 1]} : vector<16x384xf32> to vector<16x128xf32>
    %c0_12 = arith.constant 0 : index
    %c0_13 = arith.constant 0 : index
    %28 = vector.load %arg7[%c0_12, %c0_13] : memref<1x128xf32, #tpu.memory_space<vmem>>, vector<1x128xf32>
    %29 = vector.broadcast %28 : vector<1x128xf32> to vector<16x128xf32>
    %30 = arith.addf %27, %29 : vector<16x128xf32>
    %31 = arith.mulf %17, %30 : vector<16x128xf32>
    %32 = arith.addf %26, %31 : vector<16x128xf32>
    %33 = math.tanh %32 : vector<16x128xf32>
    %34 = arith.subf %0, %33 : vector<16x128xf32>
    %35 = arith.mulf %25, %34 : vector<16x128xf32>
    %36 = arith.addf %33, %35 : vector<16x128xf32>
    %c0_14 = arith.constant 0 : index
    %c0_15 = arith.constant 0 : index
    %37 = vector.load %arg8[%c0_14, %c0_15] : memref<16x128xf32, #tpu.memory_space<vmem>>, vector<16x128xf32>
    tpu.vector_store %arg8[%c0_14, %c0_15], %36 {strides = array<i32>} : memref<16x128xf32, #tpu.memory_space<vmem>>, vector<16x128xf32>,
    return
  }
  func.func @transform_0(%arg0: i32, %arg1: i32) -> (i32, i32) {
    %c0_i32 = arith.constant 0 : i32
    %c0_i32_0 = arith.constant 0 : i32
    return %arg1, %c0_i32 : i32, i32
  }
  func.func @transform_1(%arg0: i32, %arg1: i32) -> (i32, i32) {
    %c0_i32 = arith.constant 0 : i32
    %c0_i32_0 = arith.constant 0 : i32
    return %arg1, %c0_i32 : i32, i32
  }
  func.func @transform_2(%arg0: i32, %arg1: i32) -> (i32, i32) {
    %c0_i32 = arith.constant 0 : i32
    %c0_i32_0 = arith.constant 0 : i32
    return %c0_i32, %arg0 : i32, i32
  }
  func.func @transform_3(%arg0: i32, %arg1: i32) -> (i32, i32) {
    %c0_i32 = arith.constant 0 : i32
    %c0_i32_0 = arith.constant 0 : i32
    return %c0_i32, %arg0 : i32, i32
  }
  func.func @transform_4(%arg0: i32, %arg1: i32) -> (i32, i32) {
    %c0_i32 = arith.constant 0 : i32
    %c0_i32_0 = arith.constant 0 : i32
    return %c0_i32, %arg0 : i32, i32
  }
  func.func @transform_5(%arg0: i32, %arg1: i32) -> (i32, i32) {
    %c0_i32 = arith.constant 0 : i32
    %c0_i32_0 = arith.constant 0 : i32
    return %c0_i32, %arg0 : i32, i32
  }
  func.func @transform_6(%arg0: i32, %arg1: i32) -> (i32, i32) {
    %c0_i32 = arith.constant 0 : i32
    return %arg1, %arg0 : i32, i32
  }
}

module attributes {stable_mosaic.version = 11 : i64} {
  func.func @_gru_kernel_single(%arg0: i32, %arg1: i32, %arg2: memref<16x128xbf16, #tpu.memory_space<vmem>>, %arg3: memref<16x128xf32, #tpu.memory_space<vmem>>, %arg4: memref<128x384xbf16, #tpu.memory_space<vmem>>, %arg5: memref<128x384xbf16, #tpu.memory_space<vmem>>, %arg6: memref<1x384xf32, #tpu.memory_space<vmem>>, %arg7: memref<1x128xf32, #tpu.memory_space<vmem>>, %arg8: memref<16x128xf32, #tpu.memory_space<vmem>>) attributes {dimension_semantics = [#tpu.dimension_semantics<parallel>, #tpu.dimension_semantics<parallel>], iteration_bounds = array<i64: 1, 1>, scalar_prefetch = 0 : i64, scratch_operands = 0 : i64, tpu.core_type = #tpu.core_type<tc>, window_params = [{transform_indices = @transform_0, window_bounds = array<i64: 16, 128>}, {transform_indices = @transform_1, window_bounds = array<i64: 16, 128>}, {transform_indices = @transform_2, window_bounds = array<i64: 128, 384>}, {transform_indices = @transform_3, window_bounds = array<i64: 128, 384>}, {transform_indices = @transform_4, window_bounds = array<i64: 1, 384>}, {transform_indices = @transform_5, window_bounds = array<i64: 1, 128>}, {transform_indices = @transform_6, window_bounds = array<i64: 16, 128>}]} {
    %c0 = arith.constant 0 : index
    %c0_0 = arith.constant 0 : index
    %0 = vector.load %arg3[%c0, %c0_0] : memref<16x128xf32, #tpu.memory_space<vmem>>, vector<16x128xf32>
    %c0_1 = arith.constant 0 : index
    %c0_2 = arith.constant 0 : index
    %1 = vector.load %arg2[%c0_1, %c0_2] : memref<16x128xbf16, #tpu.memory_space<vmem>>, vector<16x128xbf16>
    %2 = arith.truncf %0 : vector<16x128xf32> to vector<16x128xbf16>
    %c0_3 = arith.constant 0 : index
    %c0_4 = arith.constant 0 : index
    %3 = vector.load %arg4[%c0_3, %c0_4] : memref<128x384xbf16, #tpu.memory_space<vmem>>, vector<128x384xbf16>
    %cst = arith.constant dense<0.000000e+00> : vector<16x384xf32>
    %4 = tpu.matmul %1, %3, %cst {dimension_numbers = #tpu.dot_dimension_numbers<[1], [0], [0], [1], [0, 0, 1, 1], [], []>} : vector<16x128xbf16>, vector<128x384xbf16>, vector<16x384xf32> -> vector<16x384xf32>
    %c0_5 = arith.constant 0 : index
    %c0_6 = arith.constant 0 : index
    %5 = vector.load %arg6[%c0_5, %c0_6] : memref<1x384xf32, #tpu.memory_space<vmem>>, vector<1x384xf32>
    %6 = vector.broadcast %5 : vector<1x384xf32> to vector<16x384xf32>
    %7 = arith.addf %4, %6 : vector<16x384xf32>
    %c0_7 = arith.constant 0 : index
    %c0_8 = arith.constant 0 : index
    %8 = vector.load %arg5[%c0_7, %c0_8] : memref<128x384xbf16, #tpu.memory_space<vmem>>, vector<128x384xbf16>
    %cst_9 = arith.constant dense<0.000000e+00> : vector<16x384xf32>
    %9 = tpu.matmul %2, %8, %cst_9 {dimension_numbers = #tpu.dot_dimension_numbers<[1], [0], [0], [1], [0, 0, 1, 1], [], []>} : vector<16x128xbf16>, vector<128x384xbf16>, vector<16x384xf32> -> vector<16x384xf32>
    %10 = vector.extract_strided_slice %7 {offsets = [0, 0], sizes = [16, 128], strides = [1, 1]} : vector<16x384xf32> to vector<16x128xf32>
    %11 = vector.extract_strided_slice %9 {offsets = [0, 0], sizes = [16, 128], strides = [1, 1]} : vector<16x384xf32> to vector<16x128xf32>
    %12 = arith.addf %10, %11 : vector<16x128xf32>
    %13 = arith.negf %12 : vector<16x128xf32>
    %14 = math.exp %13 : vector<16x128xf32>
    %cst_10 = arith.constant 1.000000e+00 : f32
    %15 = vector.broadcast %cst_10 : f32 to vector<16x128xf32>
    %16 = arith.addf %15, %14 : vector<16x128xf32>
    %17 = arith.divf %15, %16 : vector<16x128xf32>
    %18 = vector.extract_strided_slice %7 {offsets = [0, 128], sizes = [16, 128], strides = [1, 1]} : vector<16x384xf32> to vector<16x128xf32>
    %19 = vector.extract_strided_slice %9 {offsets = [0, 128], sizes = [16, 128], strides = [1, 1]} : vector<16x384xf32> to vector<16x128xf32>
    %20 = arith.addf %18, %19 : vector<16x128xf32>
    %21 = arith.negf %20 : vector<16x128xf32>
    %22 = math.exp %21 : vector<16x128xf32>
    %cst_11 = arith.constant 1.000000e+00 : f32
    %23 = vector.broadcast %cst_11 : f32 to vector<16x128xf32>
    %24 = arith.addf %23, %22 : vector<16x128xf32>
    %25 = arith.divf %23, %24 : vector<16x128xf32>
    %26 = vector.extract_strided_slice %7 {offsets = [0, 256], sizes = [16, 128], strides = [1, 1]} : vector<16x384xf32> to vector<16x128xf32>
    %27 = vector.extract_strided_slice %9 {offsets = [0, 256], sizes = [16, 128], strides = [1, 1]} : vector<16x384xf32> to vector<16x128xf32>
    %c0_12 = arith.constant 0 : index
    %c0_13 = arith.constant 0 : index
    %28 = vector.load %arg7[%c0_12, %c0_13] : memref<1x128xf32, #tpu.memory_space<vmem>>, vector<1x128xf32>
    %29 = vector.broadcast %28 : vector<1x128xf32> to vector<16x128xf32>
    %30 = arith.addf %27, %29 : vector<16x128xf32>
    %31 = arith.mulf %17, %30 : vector<16x128xf32>
    %32 = arith.addf %26, %31 : vector<16x128xf32>
    %33 = math.tanh %32 : vector<16x128xf32>
    %34 = arith.subf %0, %33 : vector<16x128xf32>
    %35 = arith.mulf %25, %34 : vector<16x128xf32>
    %36 = arith.addf %33, %35 : vector<16x128xf32>
    %c0_14 = arith.constant 0 : index
    %c0_15 = arith.constant 0 : index
    %37 = vector.load %arg8[%c0_14, %c0_15] : memref<16x128xf32, #tpu.memory_space<vmem>>, vector<16x128xf32>
    tpu.vector_store %arg8[%c0_14, %c0_15], %36 {strides = array<i32>} : memref<16x128xf32, #tpu.memory_space<vmem>>, vector<16x128xf32>,
    return
  }
  func.func @transform_0(%arg0: i32, %arg1: i32) -> (i32, i32) {
    %c0_i32 = arith.constant 0 : i32
    %c0_i32_0 = arith.constant 0 : i32
    return %arg1, %c0_i32 : i32, i32
  }
  func.func @transform_1(%arg0: i32, %arg1: i32) -> (i32, i32) {
    %c0_i32 = arith.constant 0 : i32
    %c0_i32_0 = arith.constant 0 : i32
    return %arg1, %c0_i32 : i32, i32
  }
  func.func @transform_2(%arg0: i32, %arg1: i32) -> (i32, i32) {
    %c0_i32 = arith.constant 0 : i32
    %c0_i32_0 = arith.constant 0 : i32
    return %c0_i32, %arg0 : i32, i32
  }
  func.func @transform_3(%arg0: i32, %arg1: i32) -> (i32, i32) {
    %c0_i32 = arith.constant 0 : i32
    %c0_i32_0 = arith.constant 0 : i32
    return %c0_i32, %arg0 : i32, i32
  }
  func.func @transform_4(%arg0: i32, %arg1: i32) -> (i32, i32) {
    %c0_i32 = arith.constant 0 : i32
    %c0_i32_0 = arith.constant 0 : i32
    return %c0_i32, %arg0 : i32, i32
  }
  func.func @transform_5(%arg0: i32, %arg1: i32) -> (i32, i32) {
    %c0_i32 = arith.constant 0 : i32
    %c0_i32_0 = arith.constant 0 : i32
    return %c0_i32, %arg0 : i32, i32
  }
  func.func @transform_6(%arg0: i32, %arg1: i32) -> (i32, i32) {
    %c0_i32 = arith.constant 0 : i32
    return %arg1, %arg0 : i32, i32
  }
}

</mosaic_0001>

<llo_original>
// kernel: tpu_custom_call.1
$region0: #{tpu_custom_call.1}
  #allocation0 [shape = 'u32[]', space=smem, size = 0x4, offset = 0x4, fixed_abs, tag = 'smem constant byte address 0x4 - core index']
  #allocation1 [shape = 'u32[144,128]{1,0:T(1,128)}', space=vmem, size = 0x12000, scoped, tag = 'internal scratch']
  %s0 = inlined_call_operand.hbm [shape: bf16[16,128], index: 0, kind: input, shape index: {}]
  %s1 = inlined_call_operand.hbm [shape: f32[16,128], index: 1, kind: input, shape index: {}]
  %s2 = inlined_call_operand.hbm [shape: bf16[128,384], index: 2, kind: input, shape index: {}]
  %s3 = inlined_call_operand.hbm [shape: bf16[128,384], index: 3, kind: input, shape index: {}]
  %s4 = inlined_call_operand.vmem [shape: f32[1,384], index: 4, kind: input, shape index: {}]
  %s5 = inlined_call_operand.vmem [shape: f32[1,128], index: 5, kind: input, shape index: {}]
  %s6 = inlined_call_operand.hbm [shape: f32[16,128], index: 6, kind: output, shape index: {}]
  %s7 = sld [smem:[#allocation0]]
  $region50: #{tpu_custom_call.1} parent=0
    _
  %s9 = ssub.s32 1, %s7
  %s10 = scalar_select 0, %s9, %s7
  $region1: #{tpu_custom_call.1} parent=0
    #allocation2 [shape = 'u8[4096]{0}', space=vmem, size = 0x1000, scoped, tag = 'input window, operand 0, single buffered']
    #allocation3 [shape = 's32[1]{0}', space=sflag, size = 0x4, scoped, tag = 'scoped memory for tpu_custom_call.1']
    #allocation4 [shape = 's32[1]{0}', space=sflag, size = 0x4, scoped, tag = 'scoped memory for tpu_custom_call.1']
    #allocation5 [shape = 'u8[8192]{0}', space=vmem, size = 0x2000, scoped, tag = 'input window, operand 1, single buffered']
    #allocation6 [shape = 's32[1]{0}', space=sflag, size = 0x4, scoped, tag = 'scoped memory for tpu_custom_call.1']
    #allocation7 [shape = 'u8[98304]{0}', space=vmem, size = 0x18000, scoped, tag = 'input window, operand 2, single buffered']
    #allocation8 [shape = 'u8[98304]{0}', space=vmem, size = 0x18000, scoped, tag = 'input window, operand 3, single buffered']
    #allocation9 [shape = 's32[1]{0}', space=sflag, size = 0x4, scoped, tag = 'scoped memory for tpu_custom_call.1']
    #allocation10 [shape = 'u8[8192]{0}', space=vmem, size = 0x2000, scoped, tag = 'output window, operand 0, single buffered']
    %11 = vsyncpa [#allocation3], 0
    %12 = vsyncpa [#allocation6], 0
    %13 = vsyncpa [#allocation9], 0
    %14 = vsyncpa [#allocation4], 0
    // Predicated region
    $region2: #{tpu_custom_call.1} parent=1 // pred_check
      _
    $region3: #{tpu_custom_call.1} parent=1 // pred_check_branch
      %16 = sbr.rel (0) target = $region5
    $region4: #{tpu_custom_call.1} parent=1 // pred_region
      %s18 = ssub.s32 128, 128
      %19 = vsyncadd [#allocation3], %s18
      %s20 = sshll.u32 [#allocation2], 4
      %s21 = int_to_ptr.vmem [resolvable:$true] %s20
      %26 = dma.hbm_to_vmem [thread:$0]  %s0, 128, %s21, [#allocation3], 64, 64, 4
    $region5: #{tpu_custom_call.1} parent=1 // pred_fallthru
      _
    // Predicated region
    $region6: #{tpu_custom_call.1} parent=1 // pred_check
      _
    $region7: #{tpu_custom_call.1} parent=1 // pred_check_branch
      %28 = sbr.rel (0) target = $region9
    $region8: #{tpu_custom_call.1} parent=1 // pred_region
      %s30 = ssub.s32 256, 256
      %31 = vsyncadd [#allocation6], %s30
      %s32 = sshll.u32 [#allocation5], 4
      %s33 = int_to_ptr.vmem [resolvable:$true] %s32
      %38 = dma.hbm_to_vmem [thread:$0]  %s1, 256, %s33, [#allocation6], 128, 128, 8
    $region9: #{tpu_custom_call.1} parent=1 // pred_fallthru
      _
    // Predicated region
    $region10: #{tpu_custom_call.1} parent=1 // pred_check
      _
    $region11: #{tpu_custom_call.1} parent=1 // pred_check_branch
      %40 = sbr.rel (0) target = $region13
    $region12: #{tpu_custom_call.1} parent=1 // pred_region
      %s42 = ssub.s32 3072, 3072
      %43 = vsyncadd [#allocation6], %s42
      %s44 = sshll.u32 [#allocation7], 4
      %s45 = int_to_ptr.vmem [resolvable:$true] %s44
      %50 = dma.hbm_to_vmem [thread:$0]  %s2, 3072, %s45, [#allocation6], 192, 192, 12
    $region13: #{tpu_custom_call.1} parent=1 // pred_fallthru
      _
    // Predicated region
    $region14: #{tpu_custom_call.1} parent=1 // pred_check
      _
    $region15: #{tpu_custom_call.1} parent=1 // pred_check_branch
      %52 = sbr.rel (0) target = $region17
    $region16: #{tpu_custom_call.1} parent=1 // pred_region
      %s54 = ssub.s32 3072, 3072
      %55 = vsyncadd [#allocation9], %s54
      %s56 = sshll.u32 [#allocation8], 4
      %s57 = int_to_ptr.vmem [resolvable:$true] %s56
      %62 = dma.hbm_to_vmem [thread:$0]  %s3, 3072, %s57, [#allocation9], 192, 192, 12
    $region17: #{tpu_custom_call.1} parent=1 // pred_fallthru
      _
    // Predicated region
    $region18: #{tpu_custom_call.1} parent=1 // pred_check
      _
    $region19: #{tpu_custom_call.1} parent=1 // pred_check_branch
      %64 = sbr.rel (0) target = $region21
    $region20: #{tpu_custom_call.1} parent=1 // pred_region
      _
    $region21: #{tpu_custom_call.1} parent=1 // pred_fallthru
      _
    // Predicated region
    $region22: #{tpu_custom_call.1} parent=1 // pred_check
      _
    $region23: #{tpu_custom_call.1} parent=1 // pred_check_branch
      %66 = sbr.rel (0) target = $region25
    $region24: #{tpu_custom_call.1} parent=1 // pred_region
      _
    $region25: #{tpu_custom_call.1} parent=1 // pred_fallthru
      _
    // Predicated region
    $region26: #{tpu_custom_call.1} parent=1 // pred_check
      _
    $region27: #{tpu_custom_call.1} parent=1 // pred_check_branch
      %68 = sbr.rel (0) target = $region29
    $region28: #{tpu_custom_call.1} parent=1 // pred_region
      %69 = dma.done [#allocation3], 128
    $region29: #{tpu_custom_call.1} parent=1 // pred_fallthru
      _
    // Predicated region
    $region30: #{tpu_custom_call.1} parent=1 // pred_check
      _
    $region31: #{tpu_custom_call.1} parent=1 // pred_check_branch
      %71 = sbr.rel (0) target = $region33
    $region32: #{tpu_custom_call.1} parent=1 // pred_region
      %72 = dma.done [#allocation6], 256
    $region33: #{tpu_custom_call.1} parent=1 // pred_fallthru
      _
    // Predicated region
    $region34: #{tpu_custom_call.1} parent=1 // pred_check
      _
    $region35: #{tpu_custom_call.1} parent=1 // pred_check_branch
      %74 = sbr.rel (0) target = $region37
    $region36: #{tpu_custom_call.1} parent=1 // pred_region
      %75 = dma.done [#allocation6], 3072
    $region37: #{tpu_custom_call.1} parent=1 // pred_fallthru
      _
    // Predicated region
    $region38: #{tpu_custom_call.1} parent=1 // pred_check
      _
    $region39: #{tpu_custom_call.1} parent=1 // pred_check_branch
      %77 = sbr.rel (0) target = $region41
    $region40: #{tpu_custom_call.1} parent=1 // pred_region
      %78 = dma.done [#allocation9], 3072
    $region41: #{tpu_custom_call.1} parent=1 // pred_fallthru
      _
    %v80 = vld [vmem:[#allocation5] sm:$0xff]
    %v81 = vld [vmem:[#allocation5 + $0x8] sm:$0xff]
    %v82 = vld [vmem:[#allocation2] sm:$0xf]
    %v83 = vld [vmem:[#allocation2 + $0x4] sm:$0xf]
    %v84 = vpack.c.bf16 %v81, %v80
    %v85 = vld [vmem:[#allocation7] sm:$0xff]
    %v86 = vld [vmem:[#allocation7 + $0x8] sm:$0xf]
    %v87 = vld [vmem:[#allocation7 + $0xc] sm:$0xff]
    %v88 = vld [vmem:[#allocation7 + $0x14] sm:$0xf]
    %v89 = vld [vmem:[#allocation7 + $0x18] sm:$0xff]
    %v90 = vld [vmem:[#allocation7 + $0x20] sm:$0xf]
    %v91 = vld [vmem:[#allocation7 + $0x24] sm:$0xff]
    %v92 = vld [vmem:[#allocation7 + $0x2c] sm:$0xf]
    %v93 = vld [vmem:[#allocation7 + $0x30] sm:$0xff]
    %v94 = vld [vmem:[#allocation7 + $0x38] sm:$0xf]
    %v95 = vld [vmem:[#allocation7 + $0x3c] sm:$0xff]
    %v96 = vld [vmem:[#allocation7 + $0x44] sm:$0xf]
    %v97 = vld [vmem:[#allocation7 + $0x48] sm:$0xff]
    %v98 = vld [vmem:[#allocation7 + $0x50] sm:$0xf]
    %v99 = vld [vmem:[#allocation7 + $0x54] sm:$0xff]
    %v100 = vld [vmem:[#allocation7 + $0x5c] sm:$0xf]
    %v101 = vld [vmem:[#allocation7 + $0x60] sm:$0xff]
    %v102 = vld [vmem:[#allocation7 + $0x68] sm:$0xf]
    %v103 = vld [vmem:[#allocation7 + $0x6c] sm:$0xff]
    %v104 = vld [vmem:[#allocation7 + $0x74] sm:$0xf]
    %v105 = vld [vmem:[#allocation7 + $0x78] sm:$0xff]
    %v106 = vld [vmem:[#allocation7 + $0x80] sm:$0xf]
    %v107 = vld [vmem:[#allocation7 + $0x84] sm:$0xff]
    %v108 = vld [vmem:[#allocation7 + $0x8c] sm:$0xf]
    %v109 = vld [vmem:[#allocation7 + $0x90] sm:$0xff]
    %v110 = vld [vmem:[#allocation7 + $0x98] sm:$0xf]
    %v111 = vld [vmem:[#allocation7 + $0x9c] sm:$0xff]
    %v112 = vld [vmem:[#allocation7 + $0xa4] sm:$0xf]
    %v113 = vld [vmem:[#allocation7 + $0xa8] sm:$0xff]
    %v114 = vld [vmem:[#allocation7 + $0xb0] sm:$0xf]
    %v115 = vld [vmem:[#allocation7 + $0xb4] sm:$0xff]
    %v116 = vld [vmem:[#allocation7 + $0xbc] sm:$0xf]
    %v117 = vld [vmem:[%s4] sm:$0x7]
    %v119 = vlaneseq
    %v120 = vshrl.u32 %v119, 7
    %v121 = vsub.s32 0, %v120
    %v122 = vrot.slane %v117, %v121
    %v123 = vlaneseq
    %v124 = vshrl.u32 %v123, 7
    %v125 = vsub.s32 1, %v124
    %v126 = vrot.slane %v117, %v125
    %v127 = vlaneseq
    %v128 = vshrl.u32 %v127, 7
    %v129 = vsub.s32 2, %v128
    %v130 = vrot.slane %v117, %v129
    %v136 = vunpack.c.l.b16 %v82
    %v137 = vunpack.c.l.b16 %v83
    %v138 = vpack.c.b16 %v137, %v136
    %v172 = vunpack.c.l.b16 %v85
    %v173 = vunpack.c.h.b16 %v85
    %v174 = vunpack.c.l.b16 %v86
    %v175 = vunpack.c.l.b16 %v87
    %v176 = vunpack.c.h.b16 %v87
    %v177 = vunpack.c.l.b16 %v88
    %v178 = vunpack.c.l.b16 %v89
    %v179 = vunpack.c.h.b16 %v89
    %v180 = vunpack.c.l.b16 %v90
    %v181 = vunpack.c.l.b16 %v91
    %v182 = vunpack.c.h.b16 %v91
    %v183 = vunpack.c.l.b16 %v92
    %v184 = vunpack.c.l.b16 %v93
    %v185 = vunpack.c.h.b16 %v93
    %v186 = vunpack.c.l.b16 %v94
    %v187 = vunpack.c.l.b16 %v95
    %v188 = vunpack.c.h.b16 %v95
    %v189 = vunpack.c.l.b16 %v96
    %v190 = vunpack.c.l.b16 %v97
    %v191 = vunpack.c.h.b16 %v97
    %v192 = vunpack.c.l.b16 %v98
    %v193 = vunpack.c.l.b16 %v99
    %v194 = vunpack.c.h.b16 %v99
    %v195 = vunpack.c.l.b16 %v100
    %v196 = vunpack.c.l.b16 %v101
    %v197 = vunpack.c.h.b16 %v101
    %v198 = vunpack.c.l.b16 %v102
    %v199 = vunpack.c.l.b16 %v103
    %v200 = vunpack.c.h.b16 %v103
    %v201 = vunpack.c.l.b16 %v104
    %v202 = vunpack.c.l.b16 %v105
    %v203 = vunpack.c.h.b16 %v105
    %v204 = vunpack.c.l.b16 %v106
    %v205 = vunpack.c.l.b16 %v107
    %v206 = vunpack.c.h.b16 %v107
    %v207 = vunpack.c.l.b16 %v108
    %v208 = vunpack.c.l.b16 %v109
    %v209 = vunpack.c.h.b16 %v109
    %v210 = vunpack.c.l.b16 %v110
    %v211 = vunpack.c.l.b16 %v111
    %v212 = vunpack.c.h.b16 %v111
    %v213 = vunpack.c.l.b16 %v112
    %v214 = vunpack.c.l.b16 %v113
    %v215 = vunpack.c.h.b16 %v113
    %v216 = vunpack.c.l.b16 %v114
    %v217 = vunpack.c.l.b16 %v115
    %v218 = vunpack.c.h.b16 %v115
    %v219 = vunpack.c.l.b16 %v116
    %v220 = vpack.c.b16 %v175, %v172
    %v221 = vpack.c.b16 %v176, %v173
    %v222 = vpack.c.b16 %v177, %v174
    %v223 = vpack.c.b16 %v181, %v178
    %v224 = vpack.c.b16 %v182, %v179
    %v225 = vpack.c.b16 %v183, %v180
    %v226 = vpack.c.b16 %v187, %v184
    %v227 = vpack.c.b16 %v188, %v185
    %v228 = vpack.c.b16 %v189, %v186
    %v229 = vpack.c.b16 %v193, %v190
    %v230 = vpack.c.b16 %v194, %v191
    %v231 = vpack.c.b16 %v195, %v192
    %v232 = vpack.c.b16 %v199, %v196
    %v233 = vpack.c.b16 %v200, %v197
    %v234 = vpack.c.b16 %v201, %v198
    %v235 = vpack.c.b16 %v205, %v202
    %v236 = vpack.c.b16 %v206, %v203
    %v237 = vpack.c.b16 %v207, %v204
    %v238 = vpack.c.b16 %v211, %v208
    %v239 = vpack.c.b16 %v212, %v209
    %v240 = vpack.c.b16 %v213, %v210
    %v241 = vpack.c.b16 %v217, %v214
    %v242 = vpack.c.b16 %v218, %v215
    %v243 = vpack.c.b16 %v219, %v216
    %268 = vmatprep.subr.bf16.mxu0 %v221
    %269 = vmatpush1.bf16.msra.mxu0 %v220
    %270 = vmatprep.subr.bf16.mxu0 %v224
    %271 = vmatpush1.bf16.msra.mxu0 %v223
    %272 = vmatprep.subr.bf16.mxu0 %v227
    %273 = vmatpush1.bf16.msra.mxu0 %v226
    %274 = vmatprep.subr.bf16.mxu0 %v230
    %275 = vmatpush1.bf16.msra.mxu0 %v229
    %276 = vmatprep.subr.bf16.mxu0 %v233
    %277 = vmatpush1.bf16.msra.mxu0 %v232
    %278 = vmatprep.subr.bf16.mxu0 %v236
    %279 = vmatpush1.bf16.msra.mxu0 %v235
    %280 = vmatprep.subr.bf16.mxu0 %v239
    %281 = vmatpush1.bf16.msra.mxu0 %v238
    %282 = vmatprep.subr.bf16.mxu0 %v242
    %283 = vmatpush1.bf16.msra.mxu0 %v241
    %284 = vmatprep.subr.bf16.mxu0 0
    %285 = vmatpush1.bf16.msra.mxu0 0
    %286 = vmatprep.subr.bf16.mxu0 0
    %287 = vmatpush1.bf16.msra.mxu0 0
    %288 = vmatprep.subr.bf16.mxu0 0
    %289 = vmatpush1.bf16.msra.mxu0 0
    %290 = vmatprep.subr.bf16.mxu0 0
    %291 = vmatpush1.bf16.msra.mxu0 0
    %292 = vmatprep.subr.bf16.mxu0 0
    %293 = vmatpush1.bf16.msra.mxu0 0
    %294 = vmatprep.subr.bf16.mxu0 0
    %295 = vmatpush1.bf16.msra.mxu0 0
    %296 = vmatprep.subr.bf16.mxu0 0
    %297 = vmatpush1.bf16.msra.mxu0 0
    %298 = vmatprep.subr.bf16.mxu0 0
    %299 = vmatpush1.bf16.msra.mxu0 0
    %300 = vmatprep.mubr.bf16.mxu0 0
    %301 = vmatmul.mubr.bf16.gmra.mrb[0].mxu0 %v138
    %v302 = vpop.f32.mrb[0].mxu0
    %v303 = vadd.f32 %v122, %v302
    %v304 = vpop.f32.mrb[0].mxu0
    %v305 = vadd.f32 %v126, %v304
    %v306 = vpop.f32.mrb[0].mxu0
    %v307 = vadd.f32 %v122, %v306
    %v308 = vpop.f32.mrb[0].mxu0
    %v309 = vadd.f32 %v126, %v308
    %310 = vdwg.mxu0
    %311 = vmatprep.subr.bf16.mxu0 0
    %312 = vmatpush1.bf16.msra.mxu0 %v222
    %313 = vmatprep.subr.bf16.mxu0 0
    %314 = vmatpush1.bf16.msra.mxu0 %v225
    %315 = vmatprep.subr.bf16.mxu0 0
    %316 = vmatpush1.bf16.msra.mxu0 %v228
    %317 = vmatprep.subr.bf16.mxu0 0
    %318 = vmatpush1.bf16.msra.mxu0 %v231
    %319 = vmatprep.subr.bf16.mxu0 0
    %320 = vmatpush1.bf16.msra.mxu0 %v234
    %321 = vmatprep.subr.bf16.mxu0 0
    %322 = vmatpush1.bf16.msra.mxu0 %v237
    %323 = vmatprep.subr.bf16.mxu0 0
    %324 = vmatpush1.bf16.msra.mxu0 %v240
    %325 = vmatprep.subr.bf16.mxu0 0
    %326 = vmatpush1.bf16.msra.mxu0 %v243
    %327 = vmatprep.subr.bf16.mxu0 0
    %328 = vmatpush1.bf16.msra.mxu0 0
    %329 = vmatprep.subr.bf16.mxu0 0
    %330 = vmatpush1.bf16.msra.mxu0 0
    %331 = vmatprep.subr.bf16.mxu0 0
    %332 = vmatpush1.bf16.msra.mxu0 0
    %333 = vmatprep.subr.bf16.mxu0 0
    %334 = vmatpush1.bf16.msra.mxu0 0
    %335 = vmatprep.subr.bf16.mxu0 0
    %336 = vmatpush1.bf16.msra.mxu0 0
    %337 = vmatprep.subr.bf16.mxu0 0
    %338 = vmatpush1.bf16.msra.mxu0 0
    %339 = vmatprep.subr.bf16.mxu0 0
    %340 = vmatpush1.bf16.msra.mxu0 0
    %341 = vmatprep.subr.bf16.mxu0 0
    %342 = vmatpush1.bf16.msra.mxu0 0
    %343 = vmatprep.mubr.bf16.mxu0 0
    %344 = vmatmul.mubr.bf16.gmra.mrb[0].mxu0 %v138
    %v345 = vpop.f32.mrb[0].mxu0
    %v346 = vadd.f32 %v130, %v345
    %v347 = vpop.f32.mrb[0].mxu0
    %v348 = vpop.f32.mrb[0].mxu0
    %v349 = vadd.f32 %v130, %v348
    %v350 = vpop.f32.mrb[0].mxu0
    %351 = vdwg.mxu0
    %v352 = vld [vmem:[#allocation8] sm:$0xff]
    %v353 = vld [vmem:[#allocation8 + $0x8] sm:$0xf]
    %v354 = vld [vmem:[#allocation8 + $0xc] sm:$0xff]
    %v355 = vld [vmem:[#allocation8 + $0x14] sm:$0xf]
    %v356 = vld [vmem:[#allocation8 + $0x18] sm:$0xff]
    %v357 = vld [vmem:[#allocation8 + $0x20] sm:$0xf]
    %v358 = vld [vmem:[#allocation8 + $0x24] sm:$0xff]
    %v359 = vld [vmem:[#allocation8 + $0x2c] sm:$0xf]
    %v360 = vld [vmem:[#allocation8 + $0x30] sm:$0xff]
    %v361 = vld [vmem:[#allocation8 + $0x38] sm:$0xf]
    %v362 = vld [vmem:[#allocation8 + $0x3c] sm:$0xff]
    %v363 = vld [vmem:[#allocation8 + $0x44] sm:$0xf]
    %v364 = vld [vmem:[#allocation8 + $0x48] sm:$0xff]
    %v365 = vld [vmem:[#allocation8 + $0x50] sm:$0xf]
    %v366 = vld [vmem:[#allocation8 + $0x54] sm:$0xff]
    %v367 = vld [vmem:[#allocation8 + $0x5c] sm:$0xf]
    %v368 = vld [vmem:[#allocation8 + $0x60] sm:$0xff]
    %v369 = vld [vmem:[#allocation8 + $0x68] sm:$0xf]
    %v370 = vld [vmem:[#allocation8 + $0x6c] sm:$0xff]
    %v371 = vld [vmem:[#allocation8 + $0x74] sm:$0xf]
    %v372 = vld [vmem:[#allocation8 + $0x78] sm:$0xff]
    %v373 = vld [vmem:[#allocation8 + $0x80] sm:$0xf]
    %v374 = vld [vmem:[#allocation8 + $0x84] sm:$0xff]
    %v375 = vld [vmem:[#allocation8 + $0x8c] sm:$0xf]
    %v376 = vld [vmem:[#allocation8 + $0x90] sm:$0xff]
    %v377 = vld [vmem:[#allocation8 + $0x98] sm:$0xf]
    %v378 = vld [vmem:[#allocation8 + $0x9c] sm:$0xff]
    %v379 = vld [vmem:[#allocation8 + $0xa4] sm:$0xf]
    %v380 = vld [vmem:[#allocation8 + $0xa8] sm:$0xff]
    %v381 = vld [vmem:[#allocation8 + $0xb0] sm:$0xf]
    %v382 = vld [vmem:[#allocation8 + $0xb4] sm:$0xff]
    %v383 = vld [vmem:[#allocation8 + $0xbc] sm:$0xf]
    %v416 = vunpack.c.l.b16 %v352
    %v417 = vunpack.c.h.b16 %v352
    %v418 = vunpack.c.l.b16 %v353
    %v419 = vunpack.c.l.b16 %v354
    %v420 = vunpack.c.h.b16 %v354
    %v421 = vunpack.c.l.b16 %v355
    %v422 = vunpack.c.l.b16 %v356
    %v423 = vunpack.c.h.b16 %v356
    %v424 = vunpack.c.l.b16 %v357
    %v425 = vunpack.c.l.b16 %v358
    %v426 = vunpack.c.h.b16 %v358
    %v427 = vunpack.c.l.b16 %v359
    %v428 = vunpack.c.l.b16 %v360
    %v429 = vunpack.c.h.b16 %v360
    %v430 = vunpack.c.l.b16 %v361
    %v431 = vunpack.c.l.b16 %v362
    %v432 = vunpack.c.h.b16 %v362
    %v433 = vunpack.c.l.b16 %v363
    %v434 = vunpack.c.l.b16 %v364
    %v435 = vunpack.c.h.b16 %v364
    %v436 = vunpack.c.l.b16 %v365
    %v437 = vunpack.c.l.b16 %v366
    %v438 = vunpack.c.h.b16 %v366
    %v439 = vunpack.c.l.b16 %v367
    %v440 = vunpack.c.l.b16 %v368
    %v441 = vunpack.c.h.b16 %v368
    %v442 = vunpack.c.l.b16 %v369
    %v443 = vunpack.c.l.b16 %v370
    %v444 = vunpack.c.h.b16 %v370
    %v445 = vunpack.c.l.b16 %v371
    %v446 = vunpack.c.l.b16 %v372
    %v447 = vunpack.c.h.b16 %v372
    %v448 = vunpack.c.l.b16 %v373
    %v449 = vunpack.c.l.b16 %v374
    %v450 = vunpack.c.h.b16 %v374
    %v451 = vunpack.c.l.b16 %v375
    %v452 = vunpack.c.l.b16 %v376
    %v453 = vunpack.c.h.b16 %v376
    %v454 = vunpack.c.l.b16 %v377
    %v455 = vunpack.c.l.b16 %v378
    %v456 = vunpack.c.h.b16 %v378
    %v457 = vunpack.c.l.b16 %v379
    %v458 = vunpack.c.l.b16 %v380
    %v459 = vunpack.c.h.b16 %v380
    %v460 = vunpack.c.l.b16 %v381
    %v461 = vunpack.c.l.b16 %v382
    %v462 = vunpack.c.h.b16 %v382
    %v463 = vunpack.c.l.b16 %v383
    %v464 = vpack.c.b16 %v419, %v416
    %v465 = vpack.c.b16 %v420, %v417
    %v466 = vpack.c.b16 %v421, %v418
    %v467 = vpack.c.b16 %v425, %v422
    %v468 = vpack.c.b16 %v426, %v423
    %v469 = vpack.c.b16 %v427, %v424
    %v470 = vpack.c.b16 %v431, %v428
    %v471 = vpack.c.b16 %v432, %v429
    %v472 = vpack.c.b16 %v433, %v430
    %v473 = vpack.c.b16 %v437, %v434
    %v474 = vpack.c.b16 %v438, %v435
    %v475 = vpack.c.b16 %v439, %v436
    %v476 = vpack.c.b16 %v443, %v440
    %v477 = vpack.c.b16 %v444, %v441
    %v478 = vpack.c.b16 %v445, %v442
    %v479 = vpack.c.b16 %v449, %v446
    %v480 = vpack.c.b16 %v450, %v447
    %v481 = vpack.c.b16 %v451, %v448
    %v482 = vpack.c.b16 %v455, %v452
    %v483 = vpack.c.b16 %v456, %v453
    %v484 = vpack.c.b16 %v457, %v454
    %v485 = vpack.c.b16 %v461, %v458
    %v486 = vpack.c.b16 %v462, %v459
    %v487 = vpack.c.b16 %v463, %v460
    %512 = vmatprep.subr.bf16.mxu0 %v465
    %513 = vmatpush1.bf16.msra.mxu0 %v464
    %514 = vmatprep.subr.bf16.mxu0 %v468
    %515 = vmatpush1.bf16.msra.mxu0 %v467
    %516 = vmatprep.subr.bf16.mxu0 %v471
    %517 = vmatpush1.bf16.msra.mxu0 %v470
    %518 = vmatprep.subr.bf16.mxu0 %v474
    %519 = vmatpush1.bf16.msra.mxu0 %v473
    %520 = vmatprep.subr.bf16.mxu0 %v477
    %521 = vmatpush1.bf16.msra.mxu0 %v476
    %522 = vmatprep.subr.bf16.mxu0 %v480
    %523 = vmatpush1.bf16.msra.mxu0 %v479
    %524 = vmatprep.subr.bf16.mxu0 %v483
    %525 = vmatpush1.bf16.msra.mxu0 %v482
    %526 = vmatprep.subr.bf16.mxu0 %v486
    %527 = vmatpush1.bf16.msra.mxu0 %v485
    %528 = vmatprep.subr.bf16.mxu0 0
    %529 = vmatpush1.bf16.msra.mxu0 0
    %530 = vmatprep.subr.bf16.mxu0 0
    %531 = vmatpush1.bf16.msra.mxu0 0
    %532 = vmatprep.subr.bf16.mxu0 0
    %533 = vmatpush1.bf16.msra.mxu0 0
    %534 = vmatprep.subr.bf16.mxu0 0
    %535 = vmatpush1.bf16.msra.mxu0 0
    %536 = vmatprep.subr.bf16.mxu0 0
    %537 = vmatpush1.bf16.msra.mxu0 0
    %538 = vmatprep.subr.bf16.mxu0 0
    %539 = vmatpush1.bf16.msra.mxu0 0
    %540 = vmatprep.subr.bf16.mxu0 0
    %541 = vmatpush1.bf16.msra.mxu0 0
    %542 = vmatprep.subr.bf16.mxu0 0
    %543 = vmatpush1.bf16.msra.mxu0 0
    %544 = vmatprep.mubr.bf16.mxu0 0
    %545 = vmatmul.mubr.bf16.gmra.mrb[0].mxu0 %v84
    %v546 = vpop.f32.mrb[0].mxu0
    %v547 = vadd.f32 0.0, %v546
    %v548 = vpop.f32.mrb[0].mxu0
    %v549 = vadd.f32 0.0, %v548
    %v550 = vpop.f32.mrb[0].mxu0
    %v551 = vadd.f32 0.0, %v550
    %v552 = vpop.f32.mrb[0].mxu0
    %v553 = vadd.f32 0.0, %v552
    %554 = vdwg.mxu0
    %555 = vmatprep.subr.bf16.mxu0 0
    %556 = vmatpush1.bf16.msra.mxu0 %v466
    %557 = vmatprep.subr.bf16.mxu0 0
    %558 = vmatpush1.bf16.msra.mxu0 %v469
    %559 = vmatprep.subr.bf16.mxu0 0
    %560 = vmatpush1.bf16.msra.mxu0 %v472
    %561 = vmatprep.subr.bf16.mxu0 0
    %562 = vmatpush1.bf16.msra.mxu0 %v475
    %563 = vmatprep.subr.bf16.mxu0 0
    %564 = vmatpush1.bf16.msra.mxu0 %v478
    %565 = vmatprep.subr.bf16.mxu0 0
    %566 = vmatpush1.bf16.msra.mxu0 %v481
    %567 = vmatprep.subr.bf16.mxu0 0
    %568 = vmatpush1.bf16.msra.mxu0 %v484
    %569 = vmatprep.subr.bf16.mxu0 0
    %570 = vmatpush1.bf16.msra.mxu0 %v487
    %571 = vmatprep.subr.bf16.mxu0 0
    %572 = vmatpush1.bf16.msra.mxu0 0
    %573 = vmatprep.subr.bf16.mxu0 0
    %574 = vmatpush1.bf16.msra.mxu0 0
    %575 = vmatprep.subr.bf16.mxu0 0
    %576 = vmatpush1.bf16.msra.mxu0 0
    %577 = vmatprep.subr.bf16.mxu0 0
    %578 = vmatpush1.bf16.msra.mxu0 0
    %579 = vmatprep.subr.bf16.mxu0 0
    %580 = vmatpush1.bf16.msra.mxu0 0
    %581 = vmatprep.subr.bf16.mxu0 0
    %582 = vmatpush1.bf16.msra.mxu0 0
    %583 = vmatprep.subr.bf16.mxu0 0
    %584 = vmatpush1.bf16.msra.mxu0 0
    %585 = vmatprep.subr.bf16.mxu0 0
    %586 = vmatpush1.bf16.msra.mxu0 0
    %587 = vmatprep.mubr.bf16.mxu0 0
    %588 = vmatmul.mubr.bf16.gmra.mrb[0].mxu0 %v84
    %v589 = vpop.f32.mrb[0].mxu0
    %v590 = vadd.f32 0.0, %v589
    %v591 = vpop.f32.mrb[0].mxu0
    %v592 = vpop.f32.mrb[0].mxu0
    %v593 = vadd.f32 0.0, %v592
    %v594 = vpop.f32.mrb[0].mxu0
    %595 = vdwg.mxu0
    %v596 = vadd.f32 %v303, %v547
    %v597 = vadd.f32 %v307, %v551
    %v598 = vxor.u32 %v596, 2147483648
    %v599 = vxor.u32 %v597, 2147483648
    %v600 = vmul.f32 %v598, 1.442695
    %v601 = vpow.pop %v600
    %v602 = vmul.f32 %v599, 1.442695
    %v603 = vpow.pop %v602
    %v604 = vadd.f32 %v601, 1.0
    %v605 = vadd.f32 %v603, 1.0
    %v606 = vrcp.pop %v604
    %v607 = vmul.f32 1.0, %v606
    %v608 = vrcp.pop %v605
    %v609 = vmul.f32 1.0, %v608
    %v610 = vadd.f32 %v305, %v549
    %v611 = vadd.f32 %v309, %v553
    %v612 = vxor.u32 %v610, 2147483648
    %v613 = vxor.u32 %v611, 2147483648
    %v614 = vmul.f32 %v612, 1.442695
    %v615 = vpow.pop %v614
    %v616 = vmul.f32 %v613, 1.442695
    %v617 = vpow.pop %v616
    %v618 = vadd.f32 %v615, 1.0
    %v619 = vadd.f32 %v617, 1.0
    %v620 = vrcp.pop %v618
    %v621 = vmul.f32 1.0, %v620
    %v622 = vrcp.pop %v619
    %v623 = vmul.f32 1.0, %v622
    %v624 = vld [vmem:[%s5] sm:$0x1]
    %v626 = vlaneseq
    %v627 = vshrl.u32 %v626, 7
    %v628 = vsub.s32 0, %v627
    %v629 = vrot.slane %v624, %v628
    %v631 = vadd.f32 %v590, %v629
    %v632 = vadd.f32 %v593, %v629
    %v633 = vmul.f32 %v607, %v631
    %v634 = vmul.f32 %v609, %v632
    %v635 = vadd.f32 %v346, %v633
    %v636 = vadd.f32 %v349, %v634
    %v637 = vtanh.pop %v635
    %v638 = vtanh.pop %v636
    %v639 = vsub.f32 %v80, %v637
    %v640 = vsub.f32 %v81, %v638
    %v641 = vmul.f32 %v621, %v639
    %v642 = vmul.f32 %v623, %v640
    %v643 = vadd.f32 %v637, %v641
    %v644 = vadd.f32 %v638, %v642
    %645 = vst [vmem:[#allocation10] sm:$0xff] %v643
    %646 = vst [vmem:[#allocation10 + $0x8] sm:$0xff] %v644
    // Predicated region
    $region42: #{tpu_custom_call.1} parent=1 // pred_check
      _
    $region43: #{tpu_custom_call.1} parent=1 // pred_check_branch
      %648 = sbr.rel (0) target = $region45
    $region44: #{tpu_custom_call.1} parent=1 // pred_region
      %s650 = ssub.s32 256, 256
      %651 = vsyncadd [#allocation4], %s650
      %s652 = sshll.u32 [#allocation10], 4
      %s653 = int_to_ptr.vmem [resolvable:$true] %s652
      %658 = dma.vmem_to_hbm [thread:$0]  %s653, 256, %s6, [#allocation4], 128, 128, 8
    $region45: #{tpu_custom_call.1} parent=1 // pred_fallthru
      _
    // Predicated region
    $region46: #{tpu_custom_call.1} parent=1 // pred_check
      _
    $region47: #{tpu_custom_call.1} parent=1 // pred_check_branch
      %660 = sbr.rel (0) target = $region49
    $region48: #{tpu_custom_call.1} parent=1 // pred_region
      %661 = dma.done [#allocation4], 256
    $region49: #{tpu_custom_call.1} parent=1 // pred_fallthru
      _
    %662 = vsyncpa [#allocation3], 1
    %663 = vsyncpa [#allocation6], 1
    %664 = vsyncpa [#allocation9], 1
    %665 = vsyncpa [#allocation4], 1

// kernel: tpu_custom_call.1
$region0: #{tpu_custom_call.1}
  #allocation0 [shape = 'u32[]', space=smem, size = 0x4, offset = 0x4, fixed_abs, tag = 'smem constant byte address 0x4 - core index']
  #allocation1 [shape = 'u32[144,128]{1,0:T(1,128)}', space=vmem, size = 0x12000, scoped, tag = 'internal scratch']
  %s0 = inlined_call_operand.hbm [shape: bf16[16,128], index: 0, kind: input, shape index: {}]
  %s1 = inlined_call_operand.hbm [shape: f32[16,128], index: 1, kind: input, shape index: {}]
  %s2 = inlined_call_operand.hbm [shape: bf16[128,384], index: 2, kind: input, shape index: {}]
  %s3 = inlined_call_operand.hbm [shape: bf16[128,384], index: 3, kind: input, shape index: {}]
  %s4 = inlined_call_operand.vmem [shape: f32[1,384], index: 4, kind: input, shape index: {}]
  %s5 = inlined_call_operand.vmem [shape: f32[1,128], index: 5, kind: input, shape index: {}]
  %s6 = inlined_call_operand.hbm [shape: f32[16,128], index: 6, kind: output, shape index: {}]
  %s7 = sld [smem:[#allocation0]]
  $region50: #{tpu_custom_call.1} parent=0
    _
  %s9 = ssub.s32 1, %s7
  %s10 = scalar_select 0, %s9, %s7
  $region1: #{tpu_custom_call.1} parent=0
    #allocation2 [shape = 'u8[4096]{0}', space=vmem, size = 0x1000, scoped, tag = 'input window, operand 0, single buffered']
    #allocation3 [shape = 's32[1]{0}', space=sflag, size = 0x4, scoped, tag = 'scoped memory for tpu_custom_call.1']
    #allocation4 [shape = 's32[1]{0}', space=sflag, size = 0x4, scoped, tag = 'scoped memory for tpu_custom_call.1']
    #allocation5 [shape = 'u8[8192]{0}', space=vmem, size = 0x2000, scoped, tag = 'input window, operand 1, single buffered']
    #allocation6 [shape = 's32[1]{0}', space=sflag, size = 0x4, scoped, tag = 'scoped memory for tpu_custom_call.1']
    #allocation7 [shape = 'u8[98304]{0}', space=vmem, size = 0x18000, scoped, tag = 'input window, operand 2, single buffered']
    #allocation8 [shape = 'u8[98304]{0}', space=vmem, size = 0x18000, scoped, tag = 'input window, operand 3, single buffered']
    #allocation9 [shape = 's32[1]{0}', space=sflag, size = 0x4, scoped, tag = 'scoped memory for tpu_custom_call.1']
    #allocation10 [shape = 'u8[8192]{0}', space=vmem, size = 0x2000, scoped, tag = 'output window, operand 0, single buffered']
    %11 = vsyncpa [#allocation3], 0
    %12 = vsyncpa [#allocation6], 0
    %13 = vsyncpa [#allocation9], 0
    %14 = vsyncpa [#allocation4], 0
    // Predicated region
    $region2: #{tpu_custom_call.1} parent=1 // pred_check
      _
    $region3: #{tpu_custom_call.1} parent=1 // pred_check_branch
      %16 = sbr.rel (0) target = $region5
    $region4: #{tpu_custom_call.1} parent=1 // pred_region
      %s18 = ssub.s32 128, 128
      %19 = vsyncadd [#allocation3], %s18
      %s20 = sshll.u32 [#allocation2], 4
      %s21 = int_to_ptr.vmem [resolvable:$true] %s20
      %26 = dma.hbm_to_vmem [thread:$0]  %s0, 128, %s21, [#allocation3], 64, 64, 4
    $region5: #{tpu_custom_call.1} parent=1 // pred_fallthru
      _
    // Predicated region
    $region6: #{tpu_custom_call.1} parent=1 // pred_check
      _
    $region7: #{tpu_custom_call.1} parent=1 // pred_check_branch
      %28 = sbr.rel (0) target = $region9
    $region8: #{tpu_custom_call.1} parent=1 // pred_region
      %s30 = ssub.s32 256, 256
      %31 = vsyncadd [#allocation6], %s30
      %s32 = sshll.u32 [#allocation5], 4
      %s33 = int_to_ptr.vmem [resolvable:$true] %s32
      %38 = dma.hbm_to_vmem [thread:$0]  %s1, 256, %s33, [#allocation6], 128, 128, 8
    $region9: #{tpu_custom_call.1} parent=1 // pred_fallthru
      _
    // Predicated region
    $region10: #{tpu_custom_call.1} parent=1 // pred_check
      _
    $region11: #{tpu_custom_call.1} parent=1 // pred_check_branch
      %40 = sbr.rel (0) target = $region13
    $region12: #{tpu_custom_call.1} parent=1 // pred_region
      %s42 = ssub.s32 3072, 3072
      %43 = vsyncadd [#allocation6], %s42
      %s44 = sshll.u32 [#allocation7], 4
      %s45 = int_to_ptr.vmem [resolvable:$true] %s44
      %50 = dma.hbm_to_vmem [thread:$0]  %s2, 3072, %s45, [#allocation6], 192, 192, 12
    $region13: #{tpu_custom_call.1} parent=1 // pred_fallthru
      _
    // Predicated region
    $region14: #{tpu_custom_call.1} parent=1 // pred_check
      _
    $region15: #{tpu_custom_call.1} parent=1 // pred_check_branch
      %52 = sbr.rel (0) target = $region17
    $region16: #{tpu_custom_call.1} parent=1 // pred_region
      %s54 = ssub.s32 3072, 3072
      %55 = vsyncadd [#allocation9], %s54
      %s56 = sshll.u32 [#allocation8], 4
      %s57 = int_to_ptr.vmem [resolvable:$true] %s56
      %62 = dma.hbm_to_vmem [thread:$0]  %s3, 3072, %s57, [#allocation9], 192, 192, 12
    $region17: #{tpu_custom_call.1} parent=1 // pred_fallthru
      _
    // Predicated region
    $region18: #{tpu_custom_call.1} parent=1 // pred_check
      _
    $region19: #{tpu_custom_call.1} parent=1 // pred_check_branch
      %64 = sbr.rel (0) target = $region21
    $region20: #{tpu_custom_call.1} parent=1 // pred_region
      _
    $region21: #{tpu_custom_call.1} parent=1 // pred_fallthru
      _
    // Predicated region
    $region22: #{tpu_custom_call.1} parent=1 // pred_check
      _
    $region23: #{tpu_custom_call.1} parent=1 // pred_check_branch
      %66 = sbr.rel (0) target = $region25
    $region24: #{tpu_custom_call.1} parent=1 // pred_region
      _
    $region25: #{tpu_custom_call.1} parent=1 // pred_fallthru
      _
    // Predicated region
    $region26: #{tpu_custom_call.1} parent=1 // pred_check
      _
    $region27: #{tpu_custom_call.1} parent=1 // pred_check_branch
      %68 = sbr.rel (0) target = $region29
    $region28: #{tpu_custom_call.1} parent=1 // pred_region
      %69 = dma.done [#allocation3], 128
    $region29: #{tpu_custom_call.1} parent=1 // pred_fallthru
      _
    // Predicated region
    $region30: #{tpu_custom_call.1} parent=1 // pred_check
      _
    $region31: #{tpu_custom_call.1} parent=1 // pred_check_branch
      %71 = sbr.rel (0) target = $region33
    $region32: #{tpu_custom_call.1} parent=1 // pred_region
      %72 = dma.done [#allocation6], 256
    $region33: #{tpu_custom_call.1} parent=1 // pred_fallthru
      _
    // Predicated region
    $region34: #{tpu_custom_call.1} parent=1 // pred_check
      _
    $region35: #{tpu_custom_call.1} parent=1 // pred_check_branch
      %74 = sbr.rel (0) target = $region37
    $region36: #{tpu_custom_call.1} parent=1 // pred_region
      %75 = dma.done [#allocation6], 3072
    $region37: #{tpu_custom_call.1} parent=1 // pred_fallthru
      _
    // Predicated region
    $region38: #{tpu_custom_call.1} parent=1 // pred_check
      _
    $region39: #{tpu_custom_call.1} parent=1 // pred_check_branch
      %77 = sbr.rel (0) target = $region41
    $region40: #{tpu_custom_call.1} parent=1 // pred_region
      %78 = dma.done [#allocation9], 3072
    $region41: #{tpu_custom_call.1} parent=1 // pred_fallthru
      _
    %v80 = vld [vmem:[#allocation5] sm:$0xff]
    %v81 = vld [vmem:[#allocation5 + $0x8] sm:$0xff]
    %v82 = vld [vmem:[#allocation2] sm:$0xf]
    %v83 = vld [vmem:[#allocation2 + $0x4] sm:$0xf]
    %v84 = vpack.c.bf16 %v81, %v80
    %v85 = vld [vmem:[#allocation7] sm:$0xff]
    %v86 = vld [vmem:[#allocation7 + $0x8] sm:$0xf]
    %v87 = vld [vmem:[#allocation7 + $0xc] sm:$0xff]
    %v88 = vld [vmem:[#allocation7 + $0x14] sm:$0xf]
    %v89 = vld [vmem:[#allocation7 + $0x18] sm:$0xff]
    %v90 = vld [vmem:[#allocation7 + $0x20] sm:$0xf]
    %v91 = vld [vmem:[#allocation7 + $0x24] sm:$0xff]
    %v92 = vld [vmem:[#allocation7 + $0x2c] sm:$0xf]
    %v93 = vld [vmem:[#allocation7 + $0x30] sm:$0xff]
    %v94 = vld [vmem:[#allocation7 + $0x38] sm:$0xf]
    %v95 = vld [vmem:[#allocation7 + $0x3c] sm:$0xff]
    %v96 = vld [vmem:[#allocation7 + $0x44] sm:$0xf]
    %v97 = vld [vmem:[#allocation7 + $0x48] sm:$0xff]
    %v98 = vld [vmem:[#allocation7 + $0x50] sm:$0xf]
    %v99 = vld [vmem:[#allocation7 + $0x54] sm:$0xff]
    %v100 = vld [vmem:[#allocation7 + $0x5c] sm:$0xf]
    %v101 = vld [vmem:[#allocation7 + $0x60] sm:$0xff]
    %v102 = vld [vmem:[#allocation7 + $0x68] sm:$0xf]
    %v103 = vld [vmem:[#allocation7 + $0x6c] sm:$0xff]
    %v104 = vld [vmem:[#allocation7 + $0x74] sm:$0xf]
    %v105 = vld [vmem:[#allocation7 + $0x78] sm:$0xff]
    %v106 = vld [vmem:[#allocation7 + $0x80] sm:$0xf]
    %v107 = vld [vmem:[#allocation7 + $0x84] sm:$0xff]
    %v108 = vld [vmem:[#allocation7 + $0x8c] sm:$0xf]
    %v109 = vld [vmem:[#allocation7 + $0x90] sm:$0xff]
    %v110 = vld [vmem:[#allocation7 + $0x98] sm:$0xf]
    %v111 = vld [vmem:[#allocation7 + $0x9c] sm:$0xff]
    %v112 = vld [vmem:[#allocation7 + $0xa4] sm:$0xf]
    %v113 = vld [vmem:[#allocation7 + $0xa8] sm:$0xff]
    %v114 = vld [vmem:[#allocation7 + $0xb0] sm:$0xf]
    %v115 = vld [vmem:[#allocation7 + $0xb4] sm:$0xff]
    %v116 = vld [vmem:[#allocation7 + $0xbc] sm:$0xf]
    %v117 = vld [vmem:[%s4] sm:$0x7]
    %v119 = vlaneseq
    %v120 = vshrl.u32 %v119, 7
    %v121 = vsub.s32 0, %v120
    %v122 = vrot.slane %v117, %v121
    %v123 = vlaneseq
    %v124 = vshrl.u32 %v123, 7
    %v125 = vsub.s32 1, %v124
    %v126 = vrot.slane %v117, %v125
    %v127 = vlaneseq
    %v128 = vshrl.u32 %v127, 7
    %v129 = vsub.s32 2, %v128
    %v130 = vrot.slane %v117, %v129
    %v136 = vunpack.c.l.b16 %v82
    %v137 = vunpack.c.l.b16 %v83
    %v138 = vpack.c.b16 %v137, %v136
    %v172 = vunpack.c.l.b16 %v85
    %v173 = vunpack.c.h.b16 %v85
    %v174 = vunpack.c.l.b16 %v86
    %v175 = vunpack.c.l.b16 %v87
    %v176 = vunpack.c.h.b16 %v87
    %v177 = vunpack.c.l.b16 %v88
    %v178 = vunpack.c.l.b16 %v89
    %v179 = vunpack.c.h.b16 %v89
    %v180 = vunpack.c.l.b16 %v90
    %v181 = vunpack.c.l.b16 %v91
    %v182 = vunpack.c.h.b16 %v91
    %v183 = vunpack.c.l.b16 %v92
    %v184 = vunpack.c.l.b16 %v93
    %v185 = vunpack.c.h.b16 %v93
    %v186 = vunpack.c.l.b16 %v94
    %v187 = vunpack.c.l.b16 %v95
    %v188 = vunpack.c.h.b16 %v95
    %v189 = vunpack.c.l.b16 %v96
    %v190 = vunpack.c.l.b16 %v97
    %v191 = vunpack.c.h.b16 %v97
    %v192 = vunpack.c.l.b16 %v98
    %v193 = vunpack.c.l.b16 %v99
    %v194 = vunpack.c.h.b16 %v99
    %v195 = vunpack.c.l.b16 %v100
    %v196 = vunpack.c.l.b16 %v101
    %v197 = vunpack.c.h.b16 %v101
    %v198 = vunpack.c.l.b16 %v102
    %v199 = vunpack.c.l.b16 %v103
    %v200 = vunpack.c.h.b16 %v103
    %v201 = vunpack.c.l.b16 %v104
    %v202 = vunpack.c.l.b16 %v105
    %v203 = vunpack.c.h.b16 %v105
    %v204 = vunpack.c.l.b16 %v106
    %v205 = vunpack.c.l.b16 %v107
    %v206 = vunpack.c.h.b16 %v107
    %v207 = vunpack.c.l.b16 %v108
    %v208 = vunpack.c.l.b16 %v109
    %v209 = vunpack.c.h.b16 %v109
    %v210 = vunpack.c.l.b16 %v110
    %v211 = vunpack.c.l.b16 %v111
    %v212 = vunpack.c.h.b16 %v111
    %v213 = vunpack.c.l.b16 %v112
    %v214 = vunpack.c.l.b16 %v113
    %v215 = vunpack.c.h.b16 %v113
    %v216 = vunpack.c.l.b16 %v114
    %v217 = vunpack.c.l.b16 %v115
    %v218 = vunpack.c.h.b16 %v115
    %v219 = vunpack.c.l.b16 %v116
    %v220 = vpack.c.b16 %v175, %v172
    %v221 = vpack.c.b16 %v176, %v173
    %v222 = vpack.c.b16 %v177, %v174
    %v223 = vpack.c.b16 %v181, %v178
    %v224 = vpack.c.b16 %v182, %v179
    %v225 = vpack.c.b16 %v183, %v180
    %v226 = vpack.c.b16 %v187, %v184
    %v227 = vpack.c.b16 %v188, %v185
    %v228 = vpack.c.b16 %v189, %v186
    %v229 = vpack.c.b16 %v193, %v190
    %v230 = vpack.c.b16 %v194, %v191
    %v231 = vpack.c.b16 %v195, %v192
    %v232 = vpack.c.b16 %v199, %v196
    %v233 = vpack.c.b16 %v200, %v197
    %v234 = vpack.c.b16 %v201, %v198
    %v235 = vpack.c.b16 %v205, %v202
    %v236 = vpack.c.b16 %v206, %v203
    %v237 = vpack.c.b16 %v207, %v204
    %v238 = vpack.c.b16 %v211, %v208
    %v239 = vpack.c.b16 %v212, %v209
    %v240 = vpack.c.b16 %v213, %v210
    %v241 = vpack.c.b16 %v217, %v214
    %v242 = vpack.c.b16 %v218, %v215
    %v243 = vpack.c.b16 %v219, %v216
    %268 = vmatprep.subr.bf16.mxu0 %v221
    %269 = vmatpush1.bf16.msra.mxu0 %v220
    %270 = vmatprep.subr.bf16.mxu0 %v224
    %271 = vmatpush1.bf16.msra.mxu0 %v223
    %272 = vmatprep.subr.bf16.mxu0 %v227
    %273 = vmatpush1.bf16.msra.mxu0 %v226
    %274 = vmatprep.subr.bf16.mxu0 %v230
    %275 = vmatpush1.bf16.msra.mxu0 %v229
    %276 = vmatprep.subr.bf16.mxu0 %v233
    %277 = vmatpush1.bf16.msra.mxu0 %v232
    %278 = vmatprep.subr.bf16.mxu0 %v236
    %279 = vmatpush1.bf16.msra.mxu0 %v235
    %280 = vmatprep.subr.bf16.mxu0 %v239
    %281 = vmatpush1.bf16.msra.mxu0 %v238
    %282 = vmatprep.subr.bf16.mxu0 %v242
    %283 = vmatpush1.bf16.msra.mxu0 %v241
    %284 = vmatprep.subr.bf16.mxu0 0
    %285 = vmatpush1.bf16.msra.mxu0 0
    %286 = vmatprep.subr.bf16.mxu0 0
    %287 = vmatpush1.bf16.msra.mxu0 0
    %288 = vmatprep.subr.bf16.mxu0 0
    %289 = vmatpush1.bf16.msra.mxu0 0
    %290 = vmatprep.subr.bf16.mxu0 0
    %291 = vmatpush1.bf16.msra.mxu0 0
    %292 = vmatprep.subr.bf16.mxu0 0
    %293 = vmatpush1.bf16.msra.mxu0 0
    %294 = vmatprep.subr.bf16.mxu0 0
    %295 = vmatpush1.bf16.msra.mxu0 0
    %296 = vmatprep.subr.bf16.mxu0 0
    %297 = vmatpush1.bf16.msra.mxu0 0
    %298 = vmatprep.subr.bf16.mxu0 0
    %299 = vmatpush1.bf16.msra.mxu0 0
    %300 = vmatprep.mubr.bf16.mxu0 0
    %301 = vmatmul.mubr.bf16.gmra.mrb[0].mxu0 %v138
    %v302 = vpop.f32.mrb[0].mxu0
    %v303 = vadd.f32 %v122, %v302
    %v304 = vpop.f32.mrb[0].mxu0
    %v305 = vadd.f32 %v126, %v304
    %v306 = vpop.f32.mrb[0].mxu0
    %v307 = vadd.f32 %v122, %v306
    %v308 = vpop.f32.mrb[0].mxu0
    %v309 = vadd.f32 %v126, %v308
    %310 = vdwg.mxu0
    %311 = vmatprep.subr.bf16.mxu0 0
    %312 = vmatpush1.bf16.msra.mxu0 %v222
    %313 = vmatprep.subr.bf16.mxu0 0
    %314 = vmatpush1.bf16.msra.mxu0 %v225
    %315 = vmatprep.subr.bf16.mxu0 0
    %316 = vmatpush1.bf16.msra.mxu0 %v228
    %317 = vmatprep.subr.bf16.mxu0 0
    %318 = vmatpush1.bf16.msra.mxu0 %v231
    %319 = vmatprep.subr.bf16.mxu0 0
    %320 = vmatpush1.bf16.msra.mxu0 %v234
    %321 = vmatprep.subr.bf16.mxu0 0
    %322 = vmatpush1.bf16.msra.mxu0 %v237
    %323 = vmatprep.subr.bf16.mxu0 0
    %324 = vmatpush1.bf16.msra.mxu0 %v240
    %325 = vmatprep.subr.bf16.mxu0 0
    %326 = vmatpush1.bf16.msra.mxu0 %v243
    %327 = vmatprep.subr.bf16.mxu0 0
    %328 = vmatpush1.bf16.msra.mxu0 0
    %329 = vmatprep.subr.bf16.mxu0 0
    %330 = vmatpush1.bf16.msra.mxu0 0
    %331 = vmatprep.subr.bf16.mxu0 0
    %332 = vmatpush1.bf16.msra.mxu0 0
    %333 = vmatprep.subr.bf16.mxu0 0
    %334 = vmatpush1.bf16.msra.mxu0 0
    %335 = vmatprep.subr.bf16.mxu0 0
    %336 = vmatpush1.bf16.msra.mxu0 0
    %337 = vmatprep.subr.bf16.mxu0 0
    %338 = vmatpush1.bf16.msra.mxu0 0
    %339 = vmatprep.subr.bf16.mxu0 0
    %340 = vmatpush1.bf16.msra.mxu0 0
    %341 = vmatprep.subr.bf16.mxu0 0
    %342 = vmatpush1.bf16.msra.mxu0 0
    %343 = vmatprep.mubr.bf16.mxu0 0
    %344 = vmatmul.mubr.bf16.gmra.mrb[0].mxu0 %v138
    %v345 = vpop.f32.mrb[0].mxu0
    %v346 = vadd.f32 %v130, %v345
    %v347 = vpop.f32.mrb[0].mxu0
    %v348 = vpop.f32.mrb[0].mxu0
    %v349 = vadd.f32 %v130, %v348
    %v350 = vpop.f32.mrb[0].mxu0
    %351 = vdwg.mxu0
    %v352 = vld [vmem:[#allocation8] sm:$0xff]
    %v353 = vld [vmem:[#allocation8 + $0x8] sm:$0xf]
    %v354 = vld [vmem:[#allocation8 + $0xc] sm:$0xff]
    %v355 = vld [vmem:[#allocation8 + $0x14] sm:$0xf]
    %v356 = vld [vmem:[#allocation8 + $0x18] sm:$0xff]
    %v357 = vld [vmem:[#allocation8 + $0x20] sm:$0xf]
    %v358 = vld [vmem:[#allocation8 + $0x24] sm:$0xff]
    %v359 = vld [vmem:[#allocation8 + $0x2c] sm:$0xf]
    %v360 = vld [vmem:[#allocation8 + $0x30] sm:$0xff]
    %v361 = vld [vmem:[#allocation8 + $0x38] sm:$0xf]
    %v362 = vld [vmem:[#allocation8 + $0x3c] sm:$0xff]
    %v363 = vld [vmem:[#allocation8 + $0x44] sm:$0xf]
    %v364 = vld [vmem:[#allocation8 + $0x48] sm:$0xff]
    %v365 = vld [vmem:[#allocation8 + $0x50] sm:$0xf]
    %v366 = vld [vmem:[#allocation8 + $0x54] sm:$0xff]
    %v367 = vld [vmem:[#allocation8 + $0x5c] sm:$0xf]
    %v368 = vld [vmem:[#allocation8 + $0x60] sm:$0xff]
    %v369 = vld [vmem:[#allocation8 + $0x68] sm:$0xf]
    %v370 = vld [vmem:[#allocation8 + $0x6c] sm:$0xff]
    %v371 = vld [vmem:[#allocation8 + $0x74] sm:$0xf]
    %v372 = vld [vmem:[#allocation8 + $0x78] sm:$0xff]
    %v373 = vld [vmem:[#allocation8 + $0x80] sm:$0xf]
    %v374 = vld [vmem:[#allocation8 + $0x84] sm:$0xff]
    %v375 = vld [vmem:[#allocation8 + $0x8c] sm:$0xf]
    %v376 = vld [vmem:[#allocation8 + $0x90] sm:$0xff]
    %v377 = vld [vmem:[#allocation8 + $0x98] sm:$0xf]
    %v378 = vld [vmem:[#allocation8 + $0x9c] sm:$0xff]
    %v379 = vld [vmem:[#allocation8 + $0xa4] sm:$0xf]
    %v380 = vld [vmem:[#allocation8 + $0xa8] sm:$0xff]
    %v381 = vld [vmem:[#allocation8 + $0xb0] sm:$0xf]
    %v382 = vld [vmem:[#allocation8 + $0xb4] sm:$0xff]
    %v383 = vld [vmem:[#allocation8 + $0xbc] sm:$0xf]
    %v416 = vunpack.c.l.b16 %v352
    %v417 = vunpack.c.h.b16 %v352
    %v418 = vunpack.c.l.b16 %v353
    %v419 = vunpack.c.l.b16 %v354
    %v420 = vunpack.c.h.b16 %v354
    %v421 = vunpack.c.l.b16 %v355
    %v422 = vunpack.c.l.b16 %v356
    %v423 = vunpack.c.h.b16 %v356
    %v424 = vunpack.c.l.b16 %v357
    %v425 = vunpack.c.l.b16 %v358
    %v426 = vunpack.c.h.b16 %v358
    %v427 = vunpack.c.l.b16 %v359
    %v428 = vunpack.c.l.b16 %v360
    %v429 = vunpack.c.h.b16 %v360
    %v430 = vunpack.c.l.b16 %v361
    %v431 = vunpack.c.l.b16 %v362
    %v432 = vunpack.c.h.b16 %v362
    %v433 = vunpack.c.l.b16 %v363
    %v434 = vunpack.c.l.b16 %v364
    %v435 = vunpack.c.h.b16 %v364
    %v436 = vunpack.c.l.b16 %v365
    %v437 = vunpack.c.l.b16 %v366
    %v438 = vunpack.c.h.b16 %v366
    %v439 = vunpack.c.l.b16 %v367
    %v440 = vunpack.c.l.b16 %v368
    %v441 = vunpack.c.h.b16 %v368
    %v442 = vunpack.c.l.b16 %v369
    %v443 = vunpack.c.l.b16 %v370
    %v444 = vunpack.c.h.b16 %v370
    %v445 = vunpack.c.l.b16 %v371
    %v446 = vunpack.c.l.b16 %v372
    %v447 = vunpack.c.h.b16 %v372
    %v448 = vunpack.c.l.b16 %v373
    %v449 = vunpack.c.l.b16 %v374
    %v450 = vunpack.c.h.b16 %v374
    %v451 = vunpack.c.l.b16 %v375
    %v452 = vunpack.c.l.b16 %v376
    %v453 = vunpack.c.h.b16 %v376
    %v454 = vunpack.c.l.b16 %v377
    %v455 = vunpack.c.l.b16 %v378
    %v456 = vunpack.c.h.b16 %v378
    %v457 = vunpack.c.l.b16 %v379
    %v458 = vunpack.c.l.b16 %v380
    %v459 = vunpack.c.h.b16 %v380
    %v460 = vunpack.c.l.b16 %v381
    %v461 = vunpack.c.l.b16 %v382
    %v462 = vunpack.c.h.b16 %v382
    %v463 = vunpack.c.l.b16 %v383
    %v464 = vpack.c.b16 %v419, %v416
    %v465 = vpack.c.b16 %v420, %v417
    %v466 = vpack.c.b16 %v421, %v418
    %v467 = vpack.c.b16 %v425, %v422
    %v468 = vpack.c.b16 %v426, %v423
    %v469 = vpack.c.b16 %v427, %v424
    %v470 = vpack.c.b16 %v431, %v428
    %v471 = vpack.c.b16 %v432, %v429
    %v472 = vpack.c.b16 %v433, %v430
    %v473 = vpack.c.b16 %v437, %v434
    %v474 = vpack.c.b16 %v438, %v435
    %v475 = vpack.c.b16 %v439, %v436
    %v476 = vpack.c.b16 %v443, %v440
    %v477 = vpack.c.b16 %v444, %v441
    %v478 = vpack.c.b16 %v445, %v442
    %v479 = vpack.c.b16 %v449, %v446
    %v480 = vpack.c.b16 %v450, %v447
    %v481 = vpack.c.b16 %v451, %v448
    %v482 = vpack.c.b16 %v455, %v452
    %v483 = vpack.c.b16 %v456, %v453
    %v484 = vpack.c.b16 %v457, %v454
    %v485 = vpack.c.b16 %v461, %v458
    %v486 = vpack.c.b16 %v462, %v459
    %v487 = vpack.c.b16 %v463, %v460
    %512 = vmatprep.subr.bf16.mxu0 %v465
    %513 = vmatpush1.bf16.msra.mxu0 %v464
    %514 = vmatprep.subr.bf16.mxu0 %v468
    %515 = vmatpush1.bf16.msra.mxu0 %v467
    %516 = vmatprep.subr.bf16.mxu0 %v471
    %517 = vmatpush1.bf16.msra.mxu0 %v470
    %518 = vmatprep.subr.bf16.mxu0 %v474
    %519 = vmatpush1.bf16.msra.mxu0 %v473
    %520 = vmatprep.subr.bf16.mxu0 %v477
    %521 = vmatpush1.bf16.msra.mxu0 %v476
    %522 = vmatprep.subr.bf16.mxu0 %v480
    %523 = vmatpush1.bf16.msra.mxu0 %v479
    %524 = vmatprep.subr.bf16.mxu0 %v483
    %525 = vmatpush1.bf16.msra.mxu0 %v482
    %526 = vmatprep.subr.bf16.mxu0 %v486
    %527 = vmatpush1.bf16.msra.mxu0 %v485
    %528 = vmatprep.subr.bf16.mxu0 0
    %529 = vmatpush1.bf16.msra.mxu0 0
    %530 = vmatprep.subr.bf16.mxu0 0
    %531 = vmatpush1.bf16.msra.mxu0 0
    %532 = vmatprep.subr.bf16.mxu0 0
    %533 = vmatpush1.bf16.msra.mxu0 0
    %534 = vmatprep.subr.bf16.mxu0 0
    %535 = vmatpush1.bf16.msra.mxu0 0
    %536 = vmatprep.subr.bf16.mxu0 0
    %537 = vmatpush1.bf16.msra.mxu0 0
    %538 = vmatprep.subr.bf16.mxu0 0
    %539 = vmatpush1.bf16.msra.mxu0 0
    %540 = vmatprep.subr.bf16.mxu0 0
    %541 = vmatpush1.bf16.msra.mxu0 0
    %542 = vmatprep.subr.bf16.mxu0 0
    %543 = vmatpush1.bf16.msra.mxu0 0
    %544 = vmatprep.mubr.bf16.mxu0 0
    %545 = vmatmul.mubr.bf16.gmra.mrb[0].mxu0 %v84
    %v546 = vpop.f32.mrb[0].mxu0
    %v547 = vadd.f32 0.0, %v546
    %v548 = vpop.f32.mrb[0].mxu0
    %v549 = vadd.f32 0.0, %v548
    %v550 = vpop.f32.mrb[0].mxu0
    %v551 = vadd.f32 0.0, %v550
    %v552 = vpop.f32.mrb[0].mxu0
    %v553 = vadd.f32 0.0, %v552
    %554 = vdwg.mxu0
    %555 = vmatprep.subr.bf16.mxu0 0
    %556 = vmatpush1.bf16.msra.mxu0 %v466
    %557 = vmatprep.subr.bf16.mxu0 0
    %558 = vmatpush1.bf16.msra.mxu0 %v469
    %559 = vmatprep.subr.bf16.mxu0 0
    %560 = vmatpush1.bf16.msra.mxu0 %v472
    %561 = vmatprep.subr.bf16.mxu0 0
    %562 = vmatpush1.bf16.msra.mxu0 %v475
    %563 = vmatprep.subr.bf16.mxu0 0
    %564 = vmatpush1.bf16.msra.mxu0 %v478
    %565 = vmatprep.subr.bf16.mxu0 0
    %566 = vmatpush1.bf16.msra.mxu0 %v481
    %567 = vmatprep.subr.bf16.mxu0 0
    %568 = vmatpush1.bf16.msra.mxu0 %v484
    %569 = vmatprep.subr.bf16.mxu0 0
    %570 = vmatpush1.bf16.msra.mxu0 %v487
    %571 = vmatprep.subr.bf16.mxu0 0
    %572 = vmatpush1.bf16.msra.mxu0 0
    %573 = vmatprep.subr.bf16.mxu0 0
    %574 = vmatpush1.bf16.msra.mxu0 0
    %575 = vmatprep.subr.bf16.mxu0 0
    %576 = vmatpush1.bf16.msra.mxu0 0
    %577 = vmatprep.subr.bf16.mxu0 0
    %578 = vmatpush1.bf16.msra.mxu0 0
    %579 = vmatprep.subr.bf16.mxu0 0
    %580 = vmatpush1.bf16.msra.mxu0 0
    %581 = vmatprep.subr.bf16.mxu0 0
    %582 = vmatpush1.bf16.msra.mxu0 0
    %583 = vmatprep.subr.bf16.mxu0 0
    %584 = vmatpush1.bf16.msra.mxu0 0
    %585 = vmatprep.subr.bf16.mxu0 0
    %586 = vmatpush1.bf16.msra.mxu0 0
    %587 = vmatprep.mubr.bf16.mxu0 0
    %588 = vmatmul.mubr.bf16.gmra.mrb[0].mxu0 %v84
    %v589 = vpop.f32.mrb[0].mxu0
    %v590 = vadd.f32 0.0, %v589
    %v591 = vpop.f32.mrb[0].mxu0
    %v592 = vpop.f32.mrb[0].mxu0
    %v593 = vadd.f32 0.0, %v592
    %v594 = vpop.f32.mrb[0].mxu0
    %595 = vdwg.mxu0
    %v596 = vadd.f32 %v303, %v547
    %v597 = vadd.f32 %v307, %v551
    %v598 = vxor.u32 %v596, 2147483648
    %v599 = vxor.u32 %v597, 2147483648
    %v600 = vmul.f32 %v598, 1.442695
    %v601 = vpow.pop %v600
    %v602 = vmul.f32 %v599, 1.442695
    %v603 = vpow.pop %v602
    %v604 = vadd.f32 %v601, 1.0
    %v605 = vadd.f32 %v603, 1.0
    %v606 = vrcp.pop %v604
    %v607 = vmul.f32 1.0, %v606
    %v608 = vrcp.pop %v605
    %v609 = vmul.f32 1.0, %v608
    %v610 = vadd.f32 %v305, %v549
    %v611 = vadd.f32 %v309, %v553
    %v612 = vxor.u32 %v610, 2147483648
    %v613 = vxor.u32 %v611, 2147483648
    %v614 = vmul.f32 %v612, 1.442695
    %v615 = vpow.pop %v614
    %v616 = vmul.f32 %v613, 1.442695
    %v617 = vpow.pop %v616
    %v618 = vadd.f32 %v615, 1.0
    %v619 = vadd.f32 %v617, 1.0
    %v620 = vrcp.pop %v618
    %v621 = vmul.f32 1.0, %v620
    %v622 = vrcp.pop %v619
    %v623 = vmul.f32 1.0, %v622
    %v624 = vld [vmem:[%s5] sm:$0x1]
    %v626 = vlaneseq
    %v627 = vshrl.u32 %v626, 7
    %v628 = vsub.s32 0, %v627
    %v629 = vrot.slane %v624, %v628
    %v631 = vadd.f32 %v590, %v629
    %v632 = vadd.f32 %v593, %v629
    %v633 = vmul.f32 %v607, %v631
    %v634 = vmul.f32 %v609, %v632
    %v635 = vadd.f32 %v346, %v633
    %v636 = vadd.f32 %v349, %v634
    %v637 = vtanh.pop %v635
    %v638 = vtanh.pop %v636
    %v639 = vsub.f32 %v80, %v637
    %v640 = vsub.f32 %v81, %v638
    %v641 = vmul.f32 %v621, %v639
    %v642 = vmul.f32 %v623, %v640
    %v643 = vadd.f32 %v637, %v641
    %v644 = vadd.f32 %v638, %v642
    %645 = vst [vmem:[#allocation10] sm:$0xff] %v643
    %646 = vst [vmem:[#allocation10 + $0x8] sm:$0xff] %v644
    // Predicated region
    $region42: #{tpu_custom_call.1} parent=1 // pred_check
      _
    $region43: #{tpu_custom_call.1} parent=1 // pred_check_branch
      %648 = sbr.rel (0) target = $region45
    $region44: #{tpu_custom_call.1} parent=1 // pred_region
      %s650 = ssub.s32 256, 256
      %651 = vsyncadd [#allocation4], %s650
      %s652 = sshll.u32 [#allocation10], 4
      %s653 = int_to_ptr.vmem [resolvable:$true] %s652
      %658 = dma.vmem_to_hbm [thread:$0]  %s653, 256, %s6, [#allocation4], 128, 128, 8
    $region45: #{tpu_custom_call.1} parent=1 // pred_fallthru
      _
    // Predicated region
    $region46: #{tpu_custom_call.1} parent=1 // pred_check
      _
    $region47: #{tpu_custom_call.1} parent=1 // pred_check_branch
      %660 = sbr.rel (0) target = $region49
    $region48: #{tpu_custom_call.1} parent=1 // pred_region
      %661 = dma.done [#allocation4], 256
    $region49: #{tpu_custom_call.1} parent=1 // pred_fallthru
      _
    %662 = vsyncpa [#allocation3], 1
    %663 = vsyncpa [#allocation6], 1
    %664 = vsyncpa [#allocation9], 1
    %665 = vsyncpa [#allocation4], 1

</llo_original>
